<compile_context>
chip_gen: v5e
topology: v5e:2x2
jax: 0.10.0
libtpu: 0.0.40
codegen_flags: <defaults>
</compile_context>

<pallas_src>
import jax
import jax.numpy as jnp
from jax.experimental import pallas as pl
from jax.experimental.pallas import tpu as pltpu

EPS = 1e-5


def add_layernorm_kernel(x_ref, y_ref, wb_ref, o_ref):
    # x_ref / y_ref / o_ref: (rows, C)   wb_ref: (2, C) -> row 0 = weight, row 1 = bias
    s = x_ref[...] + y_ref[...]                       # residual add (VPU)
    rows, C = s.shape
    inv_c = 1.0 / C                                   # static scalar

    # Single-pass statistics with the reductions on the (otherwise idle) MXU:
    # (rows, C) @ (C, 1) -> (rows, 1).  Frees the XLU; both dots back-to-back.
    ones_c = jnp.ones((C, 1), dtype=jnp.float32)
    sum_s = jnp.dot(s, ones_c, preferred_element_type=jnp.float32)
    sum_sq = jnp.dot(s * s, ones_c, preferred_element_type=jnp.float32)

    mean = sum_s * inv_c
    var = jnp.maximum(sum_sq * inv_c - mean * mean, 0.0)   # cancellation guard
    inv = jax.lax.rsqrt(var + EPS)                    # EUP (free slot)

    wb = wb_ref[...]
    w = wb[0:1, :]
    b = wb[1:2, :]
    o_ref[...] = (s - mean) * inv * w + b             # lane-dense (C = 3*128) store


def add_layernorm(x, y, weight, bias):
    """x, y: (B, H, W, C); weight, bias: (C,). Returns LayerNorm(x + y)."""
    B, H, W, C = x.shape
    rows = B * H * W
    # Contiguous NHWC -> (rows, C): collapsing major-adjacent dims is a bitcast
    # (no layout copy materializes around the custom call).
    x2 = x.reshape(rows, C)
    y2 = y.reshape(rows, C)
    # Pack weight/bias into a single (2, C) slab -> one fewer input DMA on a
    # launch-latency-bound gridless call.
    wb = jnp.concatenate([weight.reshape(1, C), bias.reshape(1, C)], axis=0)

    vmem_spec = pl.BlockSpec(memory_space=pltpu.MemorySpace.VMEM)
    bytes_accessed = (3 * rows * C + 2 * C) * 4       # x, y, out + weight/bias (f32)
    out = pl.pallas_call(
        add_layernorm_kernel,
        out_shape=jax.ShapeDtypeStruct((rows, C), x.dtype),
        in_specs=[vmem_spec, vmem_spec, vmem_spec],
        out_specs=vmem_spec,
        cost_estimate=pl.CostEstimate(
            flops=10 * rows * C,                      # add, square, 2 dots, affine
            transcendentals=rows,                     # rsqrt per row
            bytes_accessed=bytes_accessed,
        ),
    )(x2, y2, wb)
    return out.reshape(B, H, W, C)


def reference(x, y, weight, bias):
    s = x + y
    mean = jnp.mean(s, axis=-1, keepdims=True)
    var = jnp.mean((s - mean) ** 2, axis=-1, keepdims=True)
    return (s - mean) / jnp.sqrt(var + EPS) * weight + bias


if __name__ == "__main__":
    key = jax.random.PRNGKey(0)
    k1, k2 = jax.random.split(key)
    shape = (1, 14, 14, 384)
    x402 = jax.random.normal(k1, shape, dtype=jnp.float32)
    x409 = jax.random.normal(k2, shape, dtype=jnp.float32)

    # nn.LayerNorm default init: weight = 1, bias = 0
    weight = jnp.ones((384,), dtype=jnp.float32)
    bias = jnp.zeros((384,), dtype=jnp.float32)

    out = add_layernorm(x402, x409, weight, bias)
    jax.block_until_ready(out)

    ref = reference(x402, x409, weight, bias)
    assert out.shape == shape
    # Slightly looser tolerance: single-pass E[x^2]-E[x]^2 vs two-pass reference.
    assert jnp.allclose(out, ref, atol=5e-5, rtol=1e-5), "mismatch vs reference"
    print("KERNEL_OK")
</pallas_src>

<mosaic_0001>
module attributes {stable_mosaic.version = 11 : i64} {
  func.func @add_layernorm_kernel(%arg0: memref<196x384xf32, #tpu.memory_space<vmem>>, %arg1: memref<196x384xf32, #tpu.memory_space<vmem>>, %arg2: memref<2x384xf32, #tpu.memory_space<vmem>>, %arg3: memref<196x384xf32, #tpu.memory_space<vmem>>) attributes {dimension_semantics = [], scalar_prefetch = 0 : i64, scratch_operands = 0 : i64, tpu.core_type = #tpu.core_type<tc>} {
    %c0 = arith.constant 0 : index
    %c0_0 = arith.constant 0 : index
    %0 = vector.load %arg0[%c0, %c0_0] : memref<196x384xf32, #tpu.memory_space<vmem>>, vector<196x384xf32>
    %c0_1 = arith.constant 0 : index
    %c0_2 = arith.constant 0 : index
    %1 = vector.load %arg1[%c0_1, %c0_2] : memref<196x384xf32, #tpu.memory_space<vmem>>, vector<196x384xf32>
    %2 = arith.addf %0, %1 : vector<196x384xf32>
    %cst = arith.constant 1.000000e+00 : f32
    %3 = vector.broadcast %cst : f32 to vector<384x1xf32>
    %cst_3 = arith.constant dense<0.000000e+00> : vector<196x1xf32>
    %4 = tpu.matmul %2, %3, %cst_3 {dimension_numbers = #tpu.dot_dimension_numbers<[1], [0], [0], [1], [0, 0, 1, 1], [], []>} : vector<196x384xf32>, vector<384x1xf32>, vector<196x1xf32> -> vector<196x1xf32>
    %5 = arith.mulf %2, %2 : vector<196x384xf32>
    %cst_4 = arith.constant dense<0.000000e+00> : vector<196x1xf32>
    %6 = tpu.matmul %5, %3, %cst_4 {dimension_numbers = #tpu.dot_dimension_numbers<[1], [0], [0], [1], [0, 0, 1, 1], [], []>} : vector<196x384xf32>, vector<384x1xf32>, vector<196x1xf32> -> vector<196x1xf32>
    %cst_5 = arith.constant 0.00260416674 : f32
    %7 = vector.broadcast %cst_5 : f32 to vector<196x1xf32>
    %8 = arith.mulf %4, %7 : vector<196x1xf32>
    %cst_6 = arith.constant 0.00260416674 : f32
    %9 = vector.broadcast %cst_6 : f32 to vector<196x1xf32>
    %10 = arith.mulf %6, %9 : vector<196x1xf32>
    %11 = arith.mulf %8, %8 : vector<196x1xf32>
    %12 = arith.subf %10, %11 : vector<196x1xf32>
    %cst_7 = arith.constant 0.000000e+00 : f32
    %13 = vector.broadcast %cst_7 : f32 to vector<196x1xf32>
    %14 = arith.maximumf %12, %13 : vector<196x1xf32>
    %cst_8 = arith.constant 9.99999974E-6 : f32
    %15 = vector.broadcast %cst_8 : f32 to vector<196x1xf32>
    %16 = arith.addf %14, %15 : vector<196x1xf32>
    %17 = math.rsqrt %16 : vector<196x1xf32>
    %c0_9 = arith.constant 0 : index
    %c0_10 = arith.constant 0 : index
    %18 = vector.load %arg2[%c0_9, %c0_10] : memref<2x384xf32, #tpu.memory_space<vmem>>, vector<2x384xf32>
    %19 = vector.extract_strided_slice %18 {offsets = [0, 0], sizes = [1, 384], strides = [1, 1]} : vector<2x384xf32> to vector<1x384xf32>
    %20 = vector.extract_strided_slice %18 {offsets = [1, 0], sizes = [1, 384], strides = [1, 1]} : vector<2x384xf32> to vector<1x384xf32>
    %21 = vector.broadcast %8 : vector<196x1xf32> to vector<196x384xf32>
    %22 = arith.subf %2, %21 : vector<196x384xf32>
    %23 = vector.broadcast %17 : vector<196x1xf32> to vector<196x384xf32>
    %24 = arith.mulf %22, %23 : vector<196x384xf32>
    %25 = vector.broadcast %19 : vector<1x384xf32> to vector<196x384xf32>
    %26 = arith.mulf %24, %25 : vector<196x384xf32>
    %27 = vector.broadcast %20 : vector<1x384xf32> to vector<196x384xf32>
    %28 = arith.addf %26, %27 : vector<196x384xf32>
    %c0_11 = arith.constant 0 : index
    %c0_12 = arith.constant 0 : index
    %29 = vector.load %arg3[%c0_11, %c0_12] : memref<196x384xf32, #tpu.memory_space<vmem>>, vector<196x384xf32>
    tpu.vector_store %arg3[%c0_11, %c0_12], %28 {strides = array<i32>} : memref<196x384xf32, #tpu.memory_space<vmem>>, vector<196x384xf32>,
    return
  }
}

</mosaic_0001>

<llo_original>
// kernel: tpu_custom_call.1
$region0: #{tpu_custom_call.1}
  #allocation0 [shape = 'u32[]', space=smem, size = 0x4, offset = 0x4, fixed_abs, tag = 'smem constant byte address 0x4 - core index']
  #allocation1 [shape = 'u32[72,128]{1,0:T(1,128)}', space=vmem, size = 0x9000, scoped, tag = 'internal scratch']
  %s0 = inlined_call_operand.hbm [shape: f32[196,384], index: 0, kind: input, shape index: {}]
  %s1 = inlined_call_operand.hbm [shape: f32[196,384], index: 1, kind: input, shape index: {}]
  %s2 = inlined_call_operand.hbm [shape: f32[2,384], index: 2, kind: input, shape index: {}]
  %s3 = inlined_call_operand.hbm [shape: f32[196,384], index: 3, kind: output, shape index: {}]
  %s4 = sld [smem:[#allocation0]]
  $region34: #{tpu_custom_call.1} parent=0
    _
  %s6 = ssub.s32 1, %s4
  %s7 = scalar_select 0, %s6, %s4
  $region1: #{tpu_custom_call.1} parent=0
    #allocation2 [shape = 'u8[307200]{0}', space=vmem, size = 0x4b000, scoped, tag = 'input window, operand 0, single buffered']
    #allocation3 [shape = 's32[1]{0}', space=sflag, size = 0x4, scoped, tag = 'scoped memory for tpu_custom_call.1']
    #allocation4 [shape = 's32[1]{0}', space=sflag, size = 0x4, scoped, tag = 'scoped memory for tpu_custom_call.1']
    #allocation5 [shape = 'u8[307200]{0}', space=vmem, size = 0x4b000, scoped, tag = 'input window, operand 1, single buffered']
    #allocation6 [shape = 's32[1]{0}', space=sflag, size = 0x4, scoped, tag = 'scoped memory for tpu_custom_call.1']
    #allocation7 [shape = 'u8[3072]{0}', space=vmem, size = 0xc00, scoped, tag = 'input window, operand 2, single buffered']
    #allocation8 [shape = 'u8[307200]{0}', space=vmem, size = 0x4b000, scoped, tag = 'output window, operand 0, single buffered']
    %8 = vsyncpa [#allocation3], 0
    %9 = vsyncpa [#allocation6], 0
    %10 = vsyncpa [#allocation4], 0
    // Predicated region
    $region2: #{tpu_custom_call.1} parent=1 // pred_check
      _
    $region3: #{tpu_custom_call.1} parent=1 // pred_check_branch
      %12 = sbr.rel (0) target = $region5
    $region4: #{tpu_custom_call.1} parent=1 // pred_region
      %14 = vsyncadd [#allocation3], 0
      %s15 = sshll.u32 %s0, 4
      %s16 = int_to_ptr.hbm [resolvable:$true] %s15
      %s17 = sshll.u32 [#allocation2], 4
      %s18 = int_to_ptr.vmem [resolvable:$true] %s17
      %23 = dma.hbm_to_vmem [thread:$0]  %s16, 9600, %s18, [#allocation3], 384, 384, 24
    $region5: #{tpu_custom_call.1} parent=1 // pred_fallthru
      _
    // Predicated region
    $region6: #{tpu_custom_call.1} parent=1 // pred_check
      _
    $region7: #{tpu_custom_call.1} parent=1 // pred_check_branch
      %25 = sbr.rel (0) target = $region9
    $region8: #{tpu_custom_call.1} parent=1 // pred_region
      %27 = vsyncadd [#allocation6], 0
      %s28 = sshll.u32 %s1, 4
      %s29 = int_to_ptr.hbm [resolvable:$true] %s28
      %s30 = sshll.u32 [#allocation5], 4
      %s31 = int_to_ptr.vmem [resolvable:$true] %s30
      %36 = dma.hbm_to_vmem [thread:$0]  %s29, 9600, %s31, [#allocation6], 384, 384, 24
    $region9: #{tpu_custom_call.1} parent=1 // pred_fallthru
      _
    // Predicated region
    $region10: #{tpu_custom_call.1} parent=1 // pred_check
      _
    $region11: #{tpu_custom_call.1} parent=1 // pred_check_branch
      %38 = sbr.rel (0) target = $region13
    $region12: #{tpu_custom_call.1} parent=1 // pred_region
      %40 = vsyncadd [#allocation6], 0
      %s42 = sshll.u32 %s2, 4
      %s43 = int_to_ptr.hbm [resolvable:$true] %s42
      %s44 = sshll.u32 [#allocation7], 4
      %s45 = int_to_ptr.vmem [resolvable:$true] %s44
      %47 = dma.hbm_to_vmem [thread:$0]  %s43, 96, %s45, [#allocation6]
    $region13: #{tpu_custom_call.1} parent=1 // pred_fallthru
      _
    // Predicated region
    $region14: #{tpu_custom_call.1} parent=1 // pred_check
      _
    $region15: #{tpu_custom_call.1} parent=1 // pred_check_branch
      %49 = sbr.rel (0) target = $region17
    $region16: #{tpu_custom_call.1} parent=1 // pred_region
      %51 = dma.done [#allocation3], 9600
    $region17: #{tpu_custom_call.1} parent=1 // pred_fallthru
      _
    // Predicated region
    $region18: #{tpu_custom_call.1} parent=1 // pred_check
      _
    $region19: #{tpu_custom_call.1} parent=1 // pred_check_branch
      %53 = sbr.rel (0) target = $region21
    $region20: #{tpu_custom_call.1} parent=1 // pred_region
      %55 = dma.done [#allocation6], 9600
    $region21: #{tpu_custom_call.1} parent=1 // pred_fallthru
      _
    // Predicated region
    $region22: #{tpu_custom_call.1} parent=1 // pred_check
      _
    $region23: #{tpu_custom_call.1} parent=1 // pred_check_branch
      %57 = sbr.rel (0) target = $region25
    $region24: #{tpu_custom_call.1} parent=1 // pred_region
      %59 = dma.done [#allocation6], 96
    $region25: #{tpu_custom_call.1} parent=1 // pred_fallthru
      _
    %v60 = vld [vmem:[#allocation2] sm:$0xff]
    %v61 = vld [vmem:[#allocation2 + $0x8] sm:$0xff]
    %v62 = vld [vmem:[#allocation2 + $0x10] sm:$0xff]
    %v63 = vld [vmem:[#allocation2 + $0x18] sm:$0xff]
    %v64 = vld [vmem:[#allocation2 + $0x20] sm:$0xff]
    %v65 = vld [vmem:[#allocation2 + $0x28] sm:$0xff]
    %v66 = vld [vmem:[#allocation2 + $0x30] sm:$0xff]
    %v67 = vld [vmem:[#allocation2 + $0x38] sm:$0xff]
    %v68 = vld [vmem:[#allocation2 + $0x40] sm:$0xff]
    %v69 = vld [vmem:[#allocation2 + $0x48] sm:$0xff]
    %v70 = vld [vmem:[#allocation2 + $0x50] sm:$0xff]
    %v71 = vld [vmem:[#allocation2 + $0x58] sm:$0xff]
    %v72 = vld [vmem:[#allocation2 + $0x60] sm:$0xff]
    %v73 = vld [vmem:[#allocation2 + $0x68] sm:$0xff]
    %v74 = vld [vmem:[#allocation2 + $0x70] sm:$0xff]
    %v75 = vld [vmem:[#allocation2 + $0x78] sm:$0xff]
    %v76 = vld [vmem:[#allocation2 + $0x80] sm:$0xff]
    %v77 = vld [vmem:[#allocation2 + $0x88] sm:$0xff]
    %v78 = vld [vmem:[#allocation2 + $0x90] sm:$0xff]
    %v79 = vld [vmem:[#allocation2 + $0x98] sm:$0xff]
    %v80 = vld [vmem:[#allocation2 + $0xa0] sm:$0xff]
    %v81 = vld [vmem:[#allocation2 + $0xa8] sm:$0xff]
    %v82 = vld [vmem:[#allocation2 + $0xb0] sm:$0xff]
    %v83 = vld [vmem:[#allocation2 + $0xb8] sm:$0xff]
    %v84 = vld [vmem:[#allocation2 + $0xc0] sm:$0xff]
    %v85 = vld [vmem:[#allocation2 + $0xc8] sm:$0xff]
    %v86 = vld [vmem:[#allocation2 + $0xd0] sm:$0xff]
    %v87 = vld [vmem:[#allocation2 + $0xd8] sm:$0xff]
    %v88 = vld [vmem:[#allocation2 + $0xe0] sm:$0xff]
    %v89 = vld [vmem:[#allocation2 + $0xe8] sm:$0xff]
    %v90 = vld [vmem:[#allocation2 + $0xf0] sm:$0xff]
    %v91 = vld [vmem:[#allocation2 + $0xf8] sm:$0xff]
    %v92 = vld [vmem:[#allocation2 + $0x100] sm:$0xff]
    %v93 = vld [vmem:[#allocation2 + $0x108] sm:$0xff]
    %v94 = vld [vmem:[#allocation2 + $0x110] sm:$0xff]
    %v95 = vld [vmem:[#allocation2 + $0x118] sm:$0xff]
    %v96 = vld [vmem:[#allocation2 + $0x120] sm:$0xff]
    %v97 = vld [vmem:[#allocation2 + $0x128] sm:$0xff]
    %v98 = vld [vmem:[#allocation2 + $0x130] sm:$0xff]
    %v99 = vld [vmem:[#allocation2 + $0x138] sm:$0xff]
    %v100 = vld [vmem:[#allocation2 + $0x140] sm:$0xff]
    %v101 = vld [vmem:[#allocation2 + $0x148] sm:$0xff]
    %v102 = vld [vmem:[#allocation2 + $0x150] sm:$0xff]
    %v103 = vld [vmem:[#allocation2 + $0x158] sm:$0xff]
    %v104 = vld [vmem:[#allocation2 + $0x160] sm:$0xff]
    %v105 = vld [vmem:[#allocation2 + $0x168] sm:$0xff]
    %v106 = vld [vmem:[#allocation2 + $0x170] sm:$0xff]
    %v107 = vld [vmem:[#allocation2 + $0x178] sm:$0xff]
    %v108 = vld [vmem:[#allocation2 + $0x180] sm:$0xff]
    %v109 = vld [vmem:[#allocation2 + $0x188] sm:$0xff]
    %v110 = vld [vmem:[#allocation2 + $0x190] sm:$0xff]
    %v111 = vld [vmem:[#allocation2 + $0x198] sm:$0xff]
    %v112 = vld [vmem:[#allocation2 + $0x1a0] sm:$0xff]
    %v113 = vld [vmem:[#allocation2 + $0x1a8] sm:$0xff]
    %v114 = vld [vmem:[#allocation2 + $0x1b0] sm:$0xff]
    %v115 = vld [vmem:[#allocation2 + $0x1b8] sm:$0xff]
    %v116 = vld [vmem:[#allocation2 + $0x1c0] sm:$0xff]
    %v117 = vld [vmem:[#allocation2 + $0x1c8] sm:$0xff]
    %v118 = vld [vmem:[#allocation2 + $0x1d0] sm:$0xff]
    %v119 = vld [vmem:[#allocation2 + $0x1d8] sm:$0xff]
    %v120 = vld [vmem:[#allocation2 + $0x1e0] sm:$0xff]
    %v121 = vld [vmem:[#allocation2 + $0x1e8] sm:$0xff]
    %v122 = vld [vmem:[#allocation2 + $0x1f0] sm:$0xff]
    %v123 = vld [vmem:[#allocation2 + $0x1f8] sm:$0xff]
    %v124 = vld [vmem:[#allocation2 + $0x200] sm:$0xff]
    %v125 = vld [vmem:[#allocation2 + $0x208] sm:$0xff]
    %v126 = vld [vmem:[#allocation2 + $0x210] sm:$0xff]
    %v127 = vld [vmem:[#allocation2 + $0x218] sm:$0xff]
    %v128 = vld [vmem:[#allocation2 + $0x220] sm:$0xff]
    %v129 = vld [vmem:[#allocation2 + $0x228] sm:$0xff]
    %v130 = vld [vmem:[#allocation2 + $0x230] sm:$0xff]
    %v131 = vld [vmem:[#allocation2 + $0x238] sm:$0xff]
    %v132 = vld [vmem:[#allocation2 + $0x240] sm:$0xf]
    %v133 = vld [vmem:[#allocation2 + $0x248] sm:$0xf]
    %v134 = vld [vmem:[#allocation2 + $0x250] sm:$0xf]
    %v135 = vld [vmem:[#allocation5] sm:$0xff]
    %v136 = vld [vmem:[#allocation5 + $0x8] sm:$0xff]
    %v137 = vld [vmem:[#allocation5 + $0x10] sm:$0xff]
    %v138 = vld [vmem:[#allocation5 + $0x18] sm:$0xff]
    %v139 = vld [vmem:[#allocation5 + $0x20] sm:$0xff]
    %v140 = vld [vmem:[#allocation5 + $0x28] sm:$0xff]
    %v141 = vld [vmem:[#allocation5 + $0x30] sm:$0xff]
    %v142 = vld [vmem:[#allocation5 + $0x38] sm:$0xff]
    %v143 = vld [vmem:[#allocation5 + $0x40] sm:$0xff]
    %v144 = vld [vmem:[#allocation5 + $0x48] sm:$0xff]
    %v145 = vld [vmem:[#allocation5 + $0x50] sm:$0xff]
    %v146 = vld [vmem:[#allocation5 + $0x58] sm:$0xff]
    %v147 = vld [vmem:[#allocation5 + $0x60] sm:$0xff]
    %v148 = vld [vmem:[#allocation5 + $0x68] sm:$0xff]
    %v149 = vld [vmem:[#allocation5 + $0x70] sm:$0xff]
    %v150 = vld [vmem:[#allocation5 + $0x78] sm:$0xff]
    %v151 = vld [vmem:[#allocation5 + $0x80] sm:$0xff]
    %v152 = vld [vmem:[#allocation5 + $0x88] sm:$0xff]
    %v153 = vld [vmem:[#allocation5 + $0x90] sm:$0xff]
    %v154 = vld [vmem:[#allocation5 + $0x98] sm:$0xff]
    %v155 = vld [vmem:[#allocation5 + $0xa0] sm:$0xff]
    %v156 = vld [vmem:[#allocation5 + $0xa8] sm:$0xff]
    %v157 = vld [vmem:[#allocation5 + $0xb0] sm:$0xff]
    %v158 = vld [vmem:[#allocation5 + $0xb8] sm:$0xff]
    %v159 = vld [vmem:[#allocation5 + $0xc0] sm:$0xff]
    %v160 = vld [vmem:[#allocation5 + $0xc8] sm:$0xff]
    %v161 = vld [vmem:[#allocation5 + $0xd0] sm:$0xff]
    %v162 = vld [vmem:[#allocation5 + $0xd8] sm:$0xff]
    %v163 = vld [vmem:[#allocation5 + $0xe0] sm:$0xff]
    %v164 = vld [vmem:[#allocation5 + $0xe8] sm:$0xff]
    %v165 = vld [vmem:[#allocation5 + $0xf0] sm:$0xff]
    %v166 = vld [vmem:[#allocation5 + $0xf8] sm:$0xff]
    %v167 = vld [vmem:[#allocation5 + $0x100] sm:$0xff]
    %v168 = vld [vmem:[#allocation5 + $0x108] sm:$0xff]
    %v169 = vld [vmem:[#allocation5 + $0x110] sm:$0xff]
    %v170 = vld [vmem:[#allocation5 + $0x118] sm:$0xff]
    %v171 = vld [vmem:[#allocation5 + $0x120] sm:$0xff]
    %v172 = vld [vmem:[#allocation5 + $0x128] sm:$0xff]
    %v173 = vld [vmem:[#allocation5 + $0x130] sm:$0xff]
    %v174 = vld [vmem:[#allocation5 + $0x138] sm:$0xff]
    %v175 = vld [vmem:[#allocation5 + $0x140] sm:$0xff]
    %v176 = vld [vmem:[#allocation5 + $0x148] sm:$0xff]
    %v177 = vld [vmem:[#allocation5 + $0x150] sm:$0xff]
    %v178 = vld [vmem:[#allocation5 + $0x158] sm:$0xff]
    %v179 = vld [vmem:[#allocation5 + $0x160] sm:$0xff]
    %v180 = vld [vmem:[#allocation5 + $0x168] sm:$0xff]
    %v181 = vld [vmem:[#allocation5 + $0x170] sm:$0xff]
    %v182 = vld [vmem:[#allocation5 + $0x178] sm:$0xff]
    %v183 = vld [vmem:[#allocation5 + $0x180] sm:$0xff]
    %v184 = vld [vmem:[#allocation5 + $0x188] sm:$0xff]
    %v185 = vld [vmem:[#allocation5 + $0x190] sm:$0xff]
    %v186 = vld [vmem:[#allocation5 + $0x198] sm:$0xff]
    %v187 = vld [vmem:[#allocation5 + $0x1a0] sm:$0xff]
    %v188 = vld [vmem:[#allocation5 + $0x1a8] sm:$0xff]
    %v189 = vld [vmem:[#allocation5 + $0x1b0] sm:$0xff]
    %v190 = vld [vmem:[#allocation5 + $0x1b8] sm:$0xff]
    %v191 = vld [vmem:[#allocation5 + $0x1c0] sm:$0xff]
    %v192 = vld [vmem:[#allocation5 + $0x1c8] sm:$0xff]
    %v193 = vld [vmem:[#allocation5 + $0x1d0] sm:$0xff]
    %v194 = vld [vmem:[#allocation5 + $0x1d8] sm:$0xff]
    %v195 = vld [vmem:[#allocation5 + $0x1e0] sm:$0xff]
    %v196 = vld [vmem:[#allocation5 + $0x1e8] sm:$0xff]
    %v197 = vld [vmem:[#allocation5 + $0x1f0] sm:$0xff]
    %v198 = vld [vmem:[#allocation5 + $0x1f8] sm:$0xff]
    %v199 = vld [vmem:[#allocation5 + $0x200] sm:$0xff]
    %v200 = vld [vmem:[#allocation5 + $0x208] sm:$0xff]
    %v201 = vld [vmem:[#allocation5 + $0x210] sm:$0xff]
    %v202 = vld [vmem:[#allocation5 + $0x218] sm:$0xff]
    %v203 = vld [vmem:[#allocation5 + $0x220] sm:$0xff]
    %v204 = vld [vmem:[#allocation5 + $0x228] sm:$0xff]
    %v205 = vld [vmem:[#allocation5 + $0x230] sm:$0xff]
    %v206 = vld [vmem:[#allocation5 + $0x238] sm:$0xff]
    %v207 = vld [vmem:[#allocation5 + $0x240] sm:$0xf]
    %v208 = vld [vmem:[#allocation5 + $0x248] sm:$0xf]
    %v209 = vld [vmem:[#allocation5 + $0x250] sm:$0xf]
    %v210 = vadd.f32 %v60, %v135
    %v211 = vadd.f32 %v61, %v136
    %v212 = vadd.f32 %v62, %v137
    %v213 = vadd.f32 %v63, %v138
    %v214 = vadd.f32 %v64, %v139
    %v215 = vadd.f32 %v65, %v140
    %v216 = vadd.f32 %v66, %v141
    %v217 = vadd.f32 %v67, %v142
    %v218 = vadd.f32 %v68, %v143
    %v219 = vadd.f32 %v69, %v144
    %v220 = vadd.f32 %v70, %v145
    %v221 = vadd.f32 %v71, %v146
    %v222 = vadd.f32 %v72, %v147
    %v223 = vadd.f32 %v73, %v148
    %v224 = vadd.f32 %v74, %v149
    %v225 = vadd.f32 %v75, %v150
    %v226 = vadd.f32 %v76, %v151
    %v227 = vadd.f32 %v77, %v152
    %v228 = vadd.f32 %v78, %v153
    %v229 = vadd.f32 %v79, %v154
    %v230 = vadd.f32 %v80, %v155
    %v231 = vadd.f32 %v81, %v156
    %v232 = vadd.f32 %v82, %v157
    %v233 = vadd.f32 %v83, %v158
    %v234 = vadd.f32 %v84, %v159
    %v235 = vadd.f32 %v85, %v160
    %v236 = vadd.f32 %v86, %v161
    %v237 = vadd.f32 %v87, %v162
    %v238 = vadd.f32 %v88, %v163
    %v239 = vadd.f32 %v89, %v164
    %v240 = vadd.f32 %v90, %v165
    %v241 = vadd.f32 %v91, %v166
    %v242 = vadd.f32 %v92, %v167
    %v243 = vadd.f32 %v93, %v168
    %v244 = vadd.f32 %v94, %v169
    %v245 = vadd.f32 %v95, %v170
    %v246 = vadd.f32 %v96, %v171
    %v247 = vadd.f32 %v97, %v172
    %v248 = vadd.f32 %v98, %v173
    %v249 = vadd.f32 %v99, %v174
    %v250 = vadd.f32 %v100, %v175
    %v251 = vadd.f32 %v101, %v176
    %v252 = vadd.f32 %v102, %v177
    %v253 = vadd.f32 %v103, %v178
    %v254 = vadd.f32 %v104, %v179
    %v255 = vadd.f32 %v105, %v180
    %v256 = vadd.f32 %v106, %v181
    %v257 = vadd.f32 %v107, %v182
    %v258 = vadd.f32 %v108, %v183
    %v259 = vadd.f32 %v109, %v184
    %v260 = vadd.f32 %v110, %v185
    %v261 = vadd.f32 %v111, %v186
    %v262 = vadd.f32 %v112, %v187
    %v263 = vadd.f32 %v113, %v188
    %v264 = vadd.f32 %v114, %v189
    %v265 = vadd.f32 %v115, %v190
    %v266 = vadd.f32 %v116, %v191
    %v267 = vadd.f32 %v117, %v192
    %v268 = vadd.f32 %v118, %v193
    %v269 = vadd.f32 %v119, %v194
    %v270 = vadd.f32 %v120, %v195
    %v271 = vadd.f32 %v121, %v196
    %v272 = vadd.f32 %v122, %v197
    %v273 = vadd.f32 %v123, %v198
    %v274 = vadd.f32 %v124, %v199
    %v275 = vadd.f32 %v125, %v200
    %v276 = vadd.f32 %v126, %v201
    %v277 = vadd.f32 %v127, %v202
    %v278 = vadd.f32 %v128, %v203
    %v279 = vadd.f32 %v129, %v204
    %v280 = vadd.f32 %v130, %v205
    %v281 = vadd.f32 %v131, %v206
    %v282 = vadd.f32 %v132, %v207
    %v283 = vadd.f32 %v133, %v208
    %v284 = vadd.f32 %v134, %v209
    %285 = vmatpush.msra.mxu0 1.0
    %286 = vmatpush.msra.mxu0 1.0
    %287 = vmatpush.msra.mxu0 1.0
    %288 = vmatpush.msra.mxu0 1.0
    %289 = vmatpush.msra.mxu0 1.0
    %290 = vmatpush.msra.mxu0 1.0
    %291 = vmatpush.msra.mxu0 1.0
    %292 = vmatpush.msra.mxu0 1.0
    %293 = vmatpush.msra.mxu0 1.0
    %294 = vmatpush.msra.mxu0 1.0
    %295 = vmatpush.msra.mxu0 1.0
    %296 = vmatpush.msra.mxu0 1.0
    %297 = vmatpush.msra.mxu0 1.0
    %298 = vmatpush.msra.mxu0 1.0
    %299 = vmatpush.msra.mxu0 1.0
    %300 = vmatpush.msra.mxu0 1.0
    %301 = vmatmul.f32.gmra.mxu0 %v210
    %v302 = vpop.f32.mrf.mxu0
    %v303 = vadd.f32 0.0, %v302
    %304 = vmatmul.f32.gmra.mxu0 %v213
    %v305 = vpop.f32.mrf.mxu0
    %v306 = vadd.f32 0.0, %v305
    %307 = vmatmul.f32.gmra.mxu0 %v216
    %v308 = vpop.f32.mrf.mxu0
    %v309 = vadd.f32 0.0, %v308
    %310 = vmatmul.f32.gmra.mxu0 %v219
    %v311 = vpop.f32.mrf.mxu0
    %v312 = vadd.f32 0.0, %v311
    %313 = vmatmul.f32.gmra.mxu0 %v222
    %v314 = vpop.f32.mrf.mxu0
    %v315 = vadd.f32 0.0, %v314
    %316 = vmatmul.f32.gmra.mxu0 %v225
    %v317 = vpop.f32.mrf.mxu0
    %v318 = vadd.f32 0.0, %v317
    %319 = vmatmul.f32.gmra.mxu0 %v228
    %v320 = vpop.f32.mrf.mxu0
    %v321 = vadd.f32 0.0, %v320
    %322 = vmatmul.f32.gmra.mxu0 %v231
    %v323 = vpop.f32.mrf.mxu0
    %v324 = vadd.f32 0.0, %v323
    %325 = vmatmul.f32.gmra.mxu0 %v234
    %v326 = vpop.f32.mrf.mxu0
    %v327 = vadd.f32 0.0, %v326
    %328 = vmatmul.f32.gmra.mxu0 %v237
    %v329 = vpop.f32.mrf.mxu0
    %v330 = vadd.f32 0.0, %v329
    %331 = vmatmul.f32.gmra.mxu0 %v240
    %v332 = vpop.f32.mrf.mxu0
    %v333 = vadd.f32 0.0, %v332
    %334 = vmatmul.f32.gmra.mxu0 %v243
    %v335 = vpop.f32.mrf.mxu0
    %v336 = vadd.f32 0.0, %v335
    %337 = vmatmul.f32.gmra.mxu0 %v246
    %v338 = vpop.f32.mrf.mxu0
    %v339 = vadd.f32 0.0, %v338
    %340 = vmatmul.f32.gmra.mxu0 %v249
    %v341 = vpop.f32.mrf.mxu0
    %v342 = vadd.f32 0.0, %v341
    %343 = vmatmul.f32.gmra.mxu0 %v252
    %v344 = vpop.f32.mrf.mxu0
    %v345 = vadd.f32 0.0, %v344
    %346 = vmatmul.f32.gmra.mxu0 %v255
    %v347 = vpop.f32.mrf.mxu0
    %v348 = vadd.f32 0.0, %v347
    %349 = vmatmul.f32.gmra.mxu0 %v258
    %v350 = vpop.f32.mrf.mxu0
    %v351 = vadd.f32 0.0, %v350
    %352 = vmatmul.f32.gmra.mxu0 %v261
    %v353 = vpop.f32.mrf.mxu0
    %v354 = vadd.f32 0.0, %v353
    %355 = vmatmul.f32.gmra.mxu0 %v264
    %v356 = vpop.f32.mrf.mxu0
    %v357 = vadd.f32 0.0, %v356
    %358 = vmatmul.f32.gmra.mxu0 %v267
    %v359 = vpop.f32.mrf.mxu0
    %v360 = vadd.f32 0.0, %v359
    %361 = vmatmul.f32.gmra.mxu0 %v270
    %v362 = vpop.f32.mrf.mxu0
    %v363 = vadd.f32 0.0, %v362
    %364 = vmatmul.f32.gmra.mxu0 %v273
    %v365 = vpop.f32.mrf.mxu0
    %v366 = vadd.f32 0.0, %v365
    %367 = vmatmul.f32.gmra.mxu0 %v276
    %v368 = vpop.f32.mrf.mxu0
    %v369 = vadd.f32 0.0, %v368
    %370 = vmatmul.f32.gmra.mxu0 %v279
    %v371 = vpop.f32.mrf.mxu0
    %v372 = vadd.f32 0.0, %v371
    %373 = vmatmul.f32.gmra.mxu0 %v282
    %v374 = vpop.f32.mrf.mxu0
    %v375 = vadd.f32 0.0, %v374
    %376 = vdwg.mxu0
    %377 = vmatpush.msra.mxu0 1.0
    %378 = vmatpush.msra.mxu0 1.0
    %379 = vmatpush.msra.mxu0 1.0
    %380 = vmatpush.msra.mxu0 1.0
    %381 = vmatpush.msra.mxu0 1.0
    %382 = vmatpush.msra.mxu0 1.0
    %383 = vmatpush.msra.mxu0 1.0
    %384 = vmatpush.msra.mxu0 1.0
    %385 = vmatpush.msra.mxu0 1.0
    %386 = vmatpush.msra.mxu0 1.0
    %387 = vmatpush.msra.mxu0 1.0
    %388 = vmatpush.msra.mxu0 1.0
    %389 = vmatpush.msra.mxu0 1.0
    %390 = vmatpush.msra.mxu0 1.0
    %391 = vmatpush.msra.mxu0 1.0
    %392 = vmatpush.msra.mxu0 1.0
    %393 = vmatmul.f32.gmra.mxu0 %v211
    %v394 = vpop.f32.mrf.mxu0
    %v395 = vadd.f32 %v303, %v394
    %396 = vmatmul.f32.gmra.mxu0 %v214
    %v397 = vpop.f32.mrf.mxu0
    %v398 = vadd.f32 %v306, %v397
    %399 = vmatmul.f32.gmra.mxu0 %v217
    %v400 = vpop.f32.mrf.mxu0
    %v401 = vadd.f32 %v309, %v400
    %402 = vmatmul.f32.gmra.mxu0 %v220
    %v403 = vpop.f32.mrf.mxu0
    %v404 = vadd.f32 %v312, %v403
    %405 = vmatmul.f32.gmra.mxu0 %v223
    %v406 = vpop.f32.mrf.mxu0
    %v407 = vadd.f32 %v315, %v406
    %408 = vmatmul.f32.gmra.mxu0 %v226
    %v409 = vpop.f32.mrf.mxu0
    %v410 = vadd.f32 %v318, %v409
    %411 = vmatmul.f32.gmra.mxu0 %v229
    %v412 = vpop.f32.mrf.mxu0
    %v413 = vadd.f32 %v321, %v412
    %414 = vmatmul.f32.gmra.mxu0 %v232
    %v415 = vpop.f32.mrf.mxu0
    %v416 = vadd.f32 %v324, %v415
    %417 = vmatmul.f32.gmra.mxu0 %v235
    %v418 = vpop.f32.mrf.mxu0
    %v419 = vadd.f32 %v327, %v418
    %420 = vmatmul.f32.gmra.mxu0 %v238
    %v421 = vpop.f32.mrf.mxu0
    %v422 = vadd.f32 %v330, %v421
    %423 = vmatmul.f32.gmra.mxu0 %v241
    %v424 = vpop.f32.mrf.mxu0
    %v425 = vadd.f32 %v333, %v424
    %426 = vmatmul.f32.gmra.mxu0 %v244
    %v427 = vpop.f32.mrf.mxu0
    %v428 = vadd.f32 %v336, %v427
    %429 = vmatmul.f32.gmra.mxu0 %v247
    %v430 = vpop.f32.mrf.mxu0
    %v431 = vadd.f32 %v339, %v430
    %432 = vmatmul.f32.gmra.mxu0 %v250
    %v433 = vpop.f32.mrf.mxu0
    %v434 = vadd.f32 %v342, %v433
    %435 = vmatmul.f32.gmra.mxu0 %v253
    %v436 = vpop.f32.mrf.mxu0
    %v437 = vadd.f32 %v345, %v436
    %438 = vmatmul.f32.gmra.mxu0 %v256
    %v439 = vpop.f32.mrf.mxu0
    %v440 = vadd.f32 %v348, %v439
    %441 = vmatmul.f32.gmra.mxu0 %v259
    %v442 = vpop.f32.mrf.mxu0
    %v443 = vadd.f32 %v351, %v442
    %444 = vmatmul.f32.gmra.mxu0 %v262
    %v445 = vpop.f32.mrf.mxu0
    %v446 = vadd.f32 %v354, %v445
    %447 = vmatmul.f32.gmra.mxu0 %v265
    %v448 = vpop.f32.mrf.mxu0
    %v449 = vadd.f32 %v357, %v448
    %450 = vmatmul.f32.gmra.mxu0 %v268
    %v451 = vpop.f32.mrf.mxu0
    %v452 = vadd.f32 %v360, %v451
    %453 = vmatmul.f32.gmra.mxu0 %v271
    %v454 = vpop.f32.mrf.mxu0
    %v455 = vadd.f32 %v363, %v454
    %456 = vmatmul.f32.gmra.mxu0 %v274
    %v457 = vpop.f32.mrf.mxu0
    %v458 = vadd.f32 %v366, %v457
    %459 = vmatmul.f32.gmra.mxu0 %v277
    %v460 = vpop.f32.mrf.mxu0
    %v461 = vadd.f32 %v369, %v460
    %462 = vmatmul.f32.gmra.mxu0 %v280
    %v463 = vpop.f32.mrf.mxu0
    %v464 = vadd.f32 %v372, %v463
    %465 = vmatmul.f32.gmra.mxu0 %v283
    %v466 = vpop.f32.mrf.mxu0
    %v467 = vadd.f32 %v375, %v466
    %468 = vdwg.mxu0
    %469 = vmatpush.msra.mxu0 1.0
    %470 = vmatpush.msra.mxu0 1.0
    %471 = vmatpush.msra.mxu0 1.0
    %472 = vmatpush.msra.mxu0 1.0
    %473 = vmatpush.msra.mxu0 1.0
    %474 = vmatpush.msra.mxu0 1.0
    %475 = vmatpush.msra.mxu0 1.0
    %476 = vmatpush.msra.mxu0 1.0
    %477 = vmatpush.msra.mxu0 1.0
    %478 = vmatpush.msra.mxu0 1.0
    %479 = vmatpush.msra.mxu0 1.0
    %480 = vmatpush.msra.mxu0 1.0
    %481 = vmatpush.msra.mxu0 1.0
    %482 = vmatpush.msra.mxu0 1.0
    %483 = vmatpush.msra.mxu0 1.0
    %484 = vmatpush.msra.mxu0 1.0
    %485 = vmatmul.f32.gmra.mxu0 %v212
    %v486 = vpop.f32.mrf.mxu0
    %v487 = vadd.f32 %v395, %v486
    %488 = vmatmul.f32.gmra.mxu0 %v215
    %v489 = vpop.f32.mrf.mxu0
    %v490 = vadd.f32 %v398, %v489
    %491 = vmatmul.f32.gmra.mxu0 %v218
    %v492 = vpop.f32.mrf.mxu0
    %v493 = vadd.f32 %v401, %v492
    %494 = vmatmul.f32.gmra.mxu0 %v221
    %v495 = vpop.f32.mrf.mxu0
    %v496 = vadd.f32 %v404, %v495
    %497 = vmatmul.f32.gmra.mxu0 %v224
    %v498 = vpop.f32.mrf.mxu0
    %v499 = vadd.f32 %v407, %v498
    %500 = vmatmul.f32.gmra.mxu0 %v227
    %v501 = vpop.f32.mrf.mxu0
    %v502 = vadd.f32 %v410, %v501
    %503 = vmatmul.f32.gmra.mxu0 %v230
    %v504 = vpop.f32.mrf.mxu0
    %v505 = vadd.f32 %v413, %v504
    %506 = vmatmul.f32.gmra.mxu0 %v233
    %v507 = vpop.f32.mrf.mxu0
    %v508 = vadd.f32 %v416, %v507
    %509 = vmatmul.f32.gmra.mxu0 %v236
    %v510 = vpop.f32.mrf.mxu0
    %v511 = vadd.f32 %v419, %v510
    %512 = vmatmul.f32.gmra.mxu0 %v239
    %v513 = vpop.f32.mrf.mxu0
    %v514 = vadd.f32 %v422, %v513
    %515 = vmatmul.f32.gmra.mxu0 %v242
    %v516 = vpop.f32.mrf.mxu0
    %v517 = vadd.f32 %v425, %v516
    %518 = vmatmul.f32.gmra.mxu0 %v245
    %v519 = vpop.f32.mrf.mxu0
    %v520 = vadd.f32 %v428, %v519
    %521 = vmatmul.f32.gmra.mxu0 %v248
    %v522 = vpop.f32.mrf.mxu0
    %v523 = vadd.f32 %v431, %v522
    %524 = vmatmul.f32.gmra.mxu0 %v251
    %v525 = vpop.f32.mrf.mxu0
    %v526 = vadd.f32 %v434, %v525
    %527 = vmatmul.f32.gmra.mxu0 %v254
    %v528 = vpop.f32.mrf.mxu0
    %v529 = vadd.f32 %v437, %v528
    %530 = vmatmul.f32.gmra.mxu0 %v257
    %v531 = vpop.f32.mrf.mxu0
    %v532 = vadd.f32 %v440, %v531
    %533 = vmatmul.f32.gmra.mxu0 %v260
    %v534 = vpop.f32.mrf.mxu0
    %v535 = vadd.f32 %v443, %v534
    %536 = vmatmul.f32.gmra.mxu0 %v263
    %v537 = vpop.f32.mrf.mxu0
    %v538 = vadd.f32 %v446, %v537
    %539 = vmatmul.f32.gmra.mxu0 %v266
    %v540 = vpop.f32.mrf.mxu0
    %v541 = vadd.f32 %v449, %v540
    %542 = vmatmul.f32.gmra.mxu0 %v269
    %v543 = vpop.f32.mrf.mxu0
    %v544 = vadd.f32 %v452, %v543
    %545 = vmatmul.f32.gmra.mxu0 %v272
    %v546 = vpop.f32.mrf.mxu0
    %v547 = vadd.f32 %v455, %v546
    %548 = vmatmul.f32.gmra.mxu0 %v275
    %v549 = vpop.f32.mrf.mxu0
    %v550 = vadd.f32 %v458, %v549
    %551 = vmatmul.f32.gmra.mxu0 %v278
    %v552 = vpop.f32.mrf.mxu0
    %v553 = vadd.f32 %v461, %v552
    %554 = vmatmul.f32.gmra.mxu0 %v281
    %v555 = vpop.f32.mrf.mxu0
    %v556 = vadd.f32 %v464, %v555
    %557 = vmatmul.f32.gmra.mxu0 %v284
    %v558 = vpop.f32.mrf.mxu0
    %v559 = vadd.f32 %v467, %v558
    %560 = vdwg.mxu0
    %v561 = vmul.f32 %v210, %v210
    %v562 = vmul.f32 %v211, %v211
    %v563 = vmul.f32 %v212, %v212
    %v564 = vmul.f32 %v213, %v213
    %v565 = vmul.f32 %v214, %v214
    %v566 = vmul.f32 %v215, %v215
    %v567 = vmul.f32 %v216, %v216
    %v568 = vmul.f32 %v217, %v217
    %v569 = vmul.f32 %v218, %v218
    %v570 = vmul.f32 %v219, %v219
    %v571 = vmul.f32 %v220, %v220
    %v572 = vmul.f32 %v221, %v221
    %v573 = vmul.f32 %v222, %v222
    %v574 = vmul.f32 %v223, %v223
    %v575 = vmul.f32 %v224, %v224
    %v576 = vmul.f32 %v225, %v225
    %v577 = vmul.f32 %v226, %v226
    %v578 = vmul.f32 %v227, %v227
    %v579 = vmul.f32 %v228, %v228
    %v580 = vmul.f32 %v229, %v229
    %v581 = vmul.f32 %v230, %v230
    %v582 = vmul.f32 %v231, %v231
    %v583 = vmul.f32 %v232, %v232
    %v584 = vmul.f32 %v233, %v233
    %v585 = vmul.f32 %v234, %v234
    %v586 = vmul.f32 %v235, %v235
    %v587 = vmul.f32 %v236, %v236
    %v588 = vmul.f32 %v237, %v237
    %v589 = vmul.f32 %v238, %v238
    %v590 = vmul.f32 %v239, %v239
    %v591 = vmul.f32 %v240, %v240
    %v592 = vmul.f32 %v241, %v241
    %v593 = vmul.f32 %v242, %v242
    %v594 = vmul.f32 %v243, %v243
    %v595 = vmul.f32 %v244, %v244
    %v596 = vmul.f32 %v245, %v245
    %v597 = vmul.f32 %v246, %v246
    %v598 = vmul.f32 %v247, %v247
    %v599 = vmul.f32 %v248, %v248
    %v600 = vmul.f32 %v249, %v249
    %v601 = vmul.f32 %v250, %v250
    %v602 = vmul.f32 %v251, %v251
    %v603 = vmul.f32 %v252, %v252
    %v604 = vmul.f32 %v253, %v253
    %v605 = vmul.f32 %v254, %v254
    %v606 = vmul.f32 %v255, %v255
    %v607 = vmul.f32 %v256, %v256
    %v608 = vmul.f32 %v257, %v257
    %v609 = vmul.f32 %v258, %v258
    %v610 = vmul.f32 %v259, %v259
    %v611 = vmul.f32 %v260, %v260
    %v612 = vmul.f32 %v261, %v261
    %v613 = vmul.f32 %v262, %v262
    %v614 = vmul.f32 %v263, %v263
    %v615 = vmul.f32 %v264, %v264
    %v616 = vmul.f32 %v265, %v265
    %v617 = vmul.f32 %v266, %v266
    %v618 = vmul.f32 %v267, %v267
    %v619 = vmul.f32 %v268, %v268
    %v620 = vmul.f32 %v269, %v269
    %v621 = vmul.f32 %v270, %v270
    %v622 = vmul.f32 %v271, %v271
    %v623 = vmul.f32 %v272, %v272
    %v624 = vmul.f32 %v273, %v273
    %v625 = vmul.f32 %v274, %v274
    %v626 = vmul.f32 %v275, %v275
    %v627 = vmul.f32 %v276, %v276
    %v628 = vmul.f32 %v277, %v277
    %v629 = vmul.f32 %v278, %v278
    %v630 = vmul.f32 %v279, %v279
    %v631 = vmul.f32 %v280, %v280
    %v632 = vmul.f32 %v281, %v281
    %v633 = vmul.f32 %v282, %v282
    %v634 = vmul.f32 %v283, %v283
    %v635 = vmul.f32 %v284, %v284
    %636 = vmatpush.msra.mxu0 1.0
    %637 = vmatpush.msra.mxu0 1.0
    %638 = vmatpush.msra.mxu0 1.0
    %639 = vmatpush.msra.mxu0 1.0
    %640 = vmatpush.msra.mxu0 1.0
    %641 = vmatpush.msra.mxu0 1.0
    %642 = vmatpush.msra.mxu0 1.0
    %643 = vmatpush.msra.mxu0 1.0
    %644 = vmatpush.msra.mxu0 1.0
    %645 = vmatpush.msra.mxu0 1.0
    %646 = vmatpush.msra.mxu0 1.0
    %647 = vmatpush.msra.mxu0 1.0
    %648 = vmatpush.msra.mxu0 1.0
    %649 = vmatpush.msra.mxu0 1.0
    %650 = vmatpush.msra.mxu0 1.0
    %651 = vmatpush.msra.mxu0 1.0
    %652 = vmatmul.f32.gmra.mxu0 %v561
    %v653 = vpop.f32.mrf.mxu0
    %v654 = vadd.f32 0.0, %v653
    %655 = vmatmul.f32.gmra.mxu0 %v564
    %v656 = vpop.f32.mrf.mxu0
    %v657 = vadd.f32 0.0, %v656
    %658 = vmatmul.f32.gmra.mxu0 %v567
    %v659 = vpop.f32.mrf.mxu0
    %v660 = vadd.f32 0.0, %v659
    %661 = vmatmul.f32.gmra.mxu0 %v570
    %v662 = vpop.f32.mrf.mxu0
    %v663 = vadd.f32 0.0, %v662
    %664 = vmatmul.f32.gmra.mxu0 %v573
    %v665 = vpop.f32.mrf.mxu0
    %v666 = vadd.f32 0.0, %v665
    %667 = vmatmul.f32.gmra.mxu0 %v576
    %v668 = vpop.f32.mrf.mxu0
    %v669 = vadd.f32 0.0, %v668
    %670 = vmatmul.f32.gmra.mxu0 %v579
    %v671 = vpop.f32.mrf.mxu0
    %v672 = vadd.f32 0.0, %v671
    %673 = vmatmul.f32.gmra.mxu0 %v582
    %v674 = vpop.f32.mrf.mxu0
    %v675 = vadd.f32 0.0, %v674
    %676 = vmatmul.f32.gmra.mxu0 %v585
    %v677 = vpop.f32.mrf.mxu0
    %v678 = vadd.f32 0.0, %v677
    %679 = vmatmul.f32.gmra.mxu0 %v588
    %v680 = vpop.f32.mrf.mxu0
    %v681 = vadd.f32 0.0, %v680
    %682 = vmatmul.f32.gmra.mxu0 %v591
    %v683 = vpop.f32.mrf.mxu0
    %v684 = vadd.f32 0.0, %v683
    %685 = vmatmul.f32.gmra.mxu0 %v594
    %v686 = vpop.f32.mrf.mxu0
    %v687 = vadd.f32 0.0, %v686
    %688 = vmatmul.f32.gmra.mxu0 %v597
    %v689 = vpop.f32.mrf.mxu0
    %v690 = vadd.f32 0.0, %v689
    %691 = vmatmul.f32.gmra.mxu0 %v600
    %v692 = vpop.f32.mrf.mxu0
    %v693 = vadd.f32 0.0, %v692
    %694 = vmatmul.f32.gmra.mxu0 %v603
    %v695 = vpop.f32.mrf.mxu0
    %v696 = vadd.f32 0.0, %v695
    %697 = vmatmul.f32.gmra.mxu0 %v606
    %v698 = vpop.f32.mrf.mxu0
    %v699 = vadd.f32 0.0, %v698
    %700 = vmatmul.f32.gmra.mxu0 %v609
    %v701 = vpop.f32.mrf.mxu0
    %v702 = vadd.f32 0.0, %v701
    %703 = vmatmul.f32.gmra.mxu0 %v612
    %v704 = vpop.f32.mrf.mxu0
    %v705 = vadd.f32 0.0, %v704
    %706 = vmatmul.f32.gmra.mxu0 %v615
    %v707 = vpop.f32.mrf.mxu0
    %v708 = vadd.f32 0.0, %v707
    %709 = vmatmul.f32.gmra.mxu0 %v618
    %v710 = vpop.f32.mrf.mxu0
    %v711 = vadd.f32 0.0, %v710
    %712 = vmatmul.f32.gmra.mxu0 %v621
    %v713 = vpop.f32.mrf.mxu0
    %v714 = vadd.f32 0.0, %v713
    %715 = vmatmul.f32.gmra.mxu0 %v624
    %v716 = vpop.f32.mrf.mxu0
    %v717 = vadd.f32 0.0, %v716
    %718 = vmatmul.f32.gmra.mxu0 %v627
    %v719 = vpop.f32.mrf.mxu0
    %v720 = vadd.f32 0.0, %v719
    %721 = vmatmul.f32.gmra.mxu0 %v630
    %v722 = vpop.f32.mrf.mxu0
    %v723 = vadd.f32 0.0, %v722
    %724 = vmatmul.f32.gmra.mxu0 %v633
    %v725 = vpop.f32.mrf.mxu0
    %v726 = vadd.f32 0.0, %v725
    %727 = vdwg.mxu0
    %728 = vmatpush.msra.mxu0 1.0
    %729 = vmatpush.msra.mxu0 1.0
    %730 = vmatpush.msra.mxu0 1.0
    %731 = vmatpush.msra.mxu0 1.0
    %732 = vmatpush.msra.mxu0 1.0
    %733 = vmatpush.msra.mxu0 1.0
    %734 = vmatpush.msra.mxu0 1.0
    %735 = vmatpush.msra.mxu0 1.0
    %736 = vmatpush.msra.mxu0 1.0
    %737 = vmatpush.msra.mxu0 1.0
    %738 = vmatpush.msra.mxu0 1.0
    %739 = vmatpush.msra.mxu0 1.0
    %740 = vmatpush.msra.mxu0 1.0
    %741 = vmatpush.msra.mxu0 1.0
    %742 = vmatpush.msra.mxu0 1.0
    %743 = vmatpush.msra.mxu0 1.0
    %744 = vmatmul.f32.gmra.mxu0 %v562
    %v745 = vpop.f32.mrf.mxu0
    %v746 = vadd.f32 %v654, %v745
    %747 = vmatmul.f32.gmra.mxu0 %v565
    %v748 = vpop.f32.mrf.mxu0
    %v749 = vadd.f32 %v657, %v748
    %750 = vmatmul.f32.gmra.mxu0 %v568
    %v751 = vpop.f32.mrf.mxu0
    %v752 = vadd.f32 %v660, %v751
    %753 = vmatmul.f32.gmra.mxu0 %v571
    %v754 = vpop.f32.mrf.mxu0
    %v755 = vadd.f32 %v663, %v754
    %756 = vmatmul.f32.gmra.mxu0 %v574
    %v757 = vpop.f32.mrf.mxu0
    %v758 = vadd.f32 %v666, %v757
    %759 = vmatmul.f32.gmra.mxu0 %v577
    %v760 = vpop.f32.mrf.mxu0
    %v761 = vadd.f32 %v669, %v760
    %762 = vmatmul.f32.gmra.mxu0 %v580
    %v763 = vpop.f32.mrf.mxu0
    %v764 = vadd.f32 %v672, %v763
    %765 = vmatmul.f32.gmra.mxu0 %v583
    %v766 = vpop.f32.mrf.mxu0
    %v767 = vadd.f32 %v675, %v766
    %768 = vmatmul.f32.gmra.mxu0 %v586
    %v769 = vpop.f32.mrf.mxu0
    %v770 = vadd.f32 %v678, %v769
    %771 = vmatmul.f32.gmra.mxu0 %v589
    %v772 = vpop.f32.mrf.mxu0
    %v773 = vadd.f32 %v681, %v772
    %774 = vmatmul.f32.gmra.mxu0 %v592
    %v775 = vpop.f32.mrf.mxu0
    %v776 = vadd.f32 %v684, %v775
    %777 = vmatmul.f32.gmra.mxu0 %v595
    %v778 = vpop.f32.mrf.mxu0
    %v779 = vadd.f32 %v687, %v778
    %780 = vmatmul.f32.gmra.mxu0 %v598
    %v781 = vpop.f32.mrf.mxu0
    %v782 = vadd.f32 %v690, %v781
    %783 = vmatmul.f32.gmra.mxu0 %v601
    %v784 = vpop.f32.mrf.mxu0
    %v785 = vadd.f32 %v693, %v784
    %786 = vmatmul.f32.gmra.mxu0 %v604
    %v787 = vpop.f32.mrf.mxu0
    %v788 = vadd.f32 %v696, %v787
    %789 = vmatmul.f32.gmra.mxu0 %v607
    %v790 = vpop.f32.mrf.mxu0
    %v791 = vadd.f32 %v699, %v790
    %792 = vmatmul.f32.gmra.mxu0 %v610
    %v793 = vpop.f32.mrf.mxu0
    %v794 = vadd.f32 %v702, %v793
    %795 = vmatmul.f32.gmra.mxu0 %v613
    %v796 = vpop.f32.mrf.mxu0
    %v797 = vadd.f32 %v705, %v796
    %798 = vmatmul.f32.gmra.mxu0 %v616
    %v799 = vpop.f32.mrf.mxu0
    %v800 = vadd.f32 %v708, %v799
    %801 = vmatmul.f32.gmra.mxu0 %v619
    %v802 = vpop.f32.mrf.mxu0
    %v803 = vadd.f32 %v711, %v802
    %804 = vmatmul.f32.gmra.mxu0 %v622
    %v805 = vpop.f32.mrf.mxu0
    %v806 = vadd.f32 %v714, %v805
    %807 = vmatmul.f32.gmra.mxu0 %v625
    %v808 = vpop.f32.mrf.mxu0
    %v809 = vadd.f32 %v717, %v808
    %810 = vmatmul.f32.gmra.mxu0 %v628
    %v811 = vpop.f32.mrf.mxu0
    %v812 = vadd.f32 %v720, %v811
    %813 = vmatmul.f32.gmra.mxu0 %v631
    %v814 = vpop.f32.mrf.mxu0
    %v815 = vadd.f32 %v723, %v814
    %816 = vmatmul.f32.gmra.mxu0 %v634
    %v817 = vpop.f32.mrf.mxu0
    %v818 = vadd.f32 %v726, %v817
    %819 = vdwg.mxu0
    %820 = vmatpush.msra.mxu0 1.0
    %821 = vmatpush.msra.mxu0 1.0
    %822 = vmatpush.msra.mxu0 1.0
    %823 = vmatpush.msra.mxu0 1.0
    %824 = vmatpush.msra.mxu0 1.0
    %825 = vmatpush.msra.mxu0 1.0
    %826 = vmatpush.msra.mxu0 1.0
    %827 = vmatpush.msra.mxu0 1.0
    %828 = vmatpush.msra.mxu0 1.0
    %829 = vmatpush.msra.mxu0 1.0
    %830 = vmatpush.msra.mxu0 1.0
    %831 = vmatpush.msra.mxu0 1.0
    %832 = vmatpush.msra.mxu0 1.0
    %833 = vmatpush.msra.mxu0 1.0
    %834 = vmatpush.msra.mxu0 1.0
    %835 = vmatpush.msra.mxu0 1.0
    %836 = vmatmul.f32.gmra.mxu0 %v563
    %v837 = vpop.f32.mrf.mxu0
    %v838 = vadd.f32 %v746, %v837
    %839 = vmatmul.f32.gmra.mxu0 %v566
    %v840 = vpop.f32.mrf.mxu0
    %v841 = vadd.f32 %v749, %v840
    %842 = vmatmul.f32.gmra.mxu0 %v569
    %v843 = vpop.f32.mrf.mxu0
    %v844 = vadd.f32 %v752, %v843
    %845 = vmatmul.f32.gmra.mxu0 %v572
    %v846 = vpop.f32.mrf.mxu0
    %v847 = vadd.f32 %v755, %v846
    %848 = vmatmul.f32.gmra.mxu0 %v575
    %v849 = vpop.f32.mrf.mxu0
    %v850 = vadd.f32 %v758, %v849
    %851 = vmatmul.f32.gmra.mxu0 %v578
    %v852 = vpop.f32.mrf.mxu0
    %v853 = vadd.f32 %v761, %v852
    %854 = vmatmul.f32.gmra.mxu0 %v581
    %v855 = vpop.f32.mrf.mxu0
    %v856 = vadd.f32 %v764, %v855
    %857 = vmatmul.f32.gmra.mxu0 %v584
    %v858 = vpop.f32.mrf.mxu0
    %v859 = vadd.f32 %v767, %v858
    %860 = vmatmul.f32.gmra.mxu0 %v587
    %v861 = vpop.f32.mrf.mxu0
    %v862 = vadd.f32 %v770, %v861
    %863 = vmatmul.f32.gmra.mxu0 %v590
    %v864 = vpop.f32.mrf.mxu0
    %v865 = vadd.f32 %v773, %v864
    %866 = vmatmul.f32.gmra.mxu0 %v593
    %v867 = vpop.f32.mrf.mxu0
    %v868 = vadd.f32 %v776, %v867
    %869 = vmatmul.f32.gmra.mxu0 %v596
    %v870 = vpop.f32.mrf.mxu0
    %v871 = vadd.f32 %v779, %v870
    %872 = vmatmul.f32.gmra.mxu0 %v599
    %v873 = vpop.f32.mrf.mxu0
    %v874 = vadd.f32 %v782, %v873
    %875 = vmatmul.f32.gmra.mxu0 %v602
    %v876 = vpop.f32.mrf.mxu0
    %v877 = vadd.f32 %v785, %v876
    %878 = vmatmul.f32.gmra.mxu0 %v605
    %v879 = vpop.f32.mrf.mxu0
    %v880 = vadd.f32 %v788, %v879
    %881 = vmatmul.f32.gmra.mxu0 %v608
    %v882 = vpop.f32.mrf.mxu0
    %v883 = vadd.f32 %v791, %v882
    %884 = vmatmul.f32.gmra.mxu0 %v611
    %v885 = vpop.f32.mrf.mxu0
    %v886 = vadd.f32 %v794, %v885
    %887 = vmatmul.f32.gmra.mxu0 %v614
    %v888 = vpop.f32.mrf.mxu0
    %v889 = vadd.f32 %v797, %v888
    %890 = vmatmul.f32.gmra.mxu0 %v617
    %v891 = vpop.f32.mrf.mxu0
    %v892 = vadd.f32 %v800, %v891
    %893 = vmatmul.f32.gmra.mxu0 %v620
    %v894 = vpop.f32.mrf.mxu0
    %v895 = vadd.f32 %v803, %v894
    %896 = vmatmul.f32.gmra.mxu0 %v623
    %v897 = vpop.f32.mrf.mxu0
    %v898 = vadd.f32 %v806, %v897
    %899 = vmatmul.f32.gmra.mxu0 %v626
    %v900 = vpop.f32.mrf.mxu0
    %v901 = vadd.f32 %v809, %v900
    %902 = vmatmul.f32.gmra.mxu0 %v629
    %v903 = vpop.f32.mrf.mxu0
    %v904 = vadd.f32 %v812, %v903
    %905 = vmatmul.f32.gmra.mxu0 %v632
    %v906 = vpop.f32.mrf.mxu0
    %v907 = vadd.f32 %v815, %v906
    %908 = vmatmul.f32.gmra.mxu0 %v635
    %v909 = vpop.f32.mrf.mxu0
    %v910 = vadd.f32 %v818, %v909
    %911 = vdwg.mxu0
    %v912 = vmul.f32 %v487, 0.0026041667
    %v913 = vmul.f32 %v490, 0.0026041667
    %v914 = vmul.f32 %v493, 0.0026041667
    %v915 = vmul.f32 %v496, 0.0026041667
    %v916 = vmul.f32 %v499, 0.0026041667
    %v917 = vmul.f32 %v502, 0.0026041667
    %v918 = vmul.f32 %v505, 0.0026041667
    %v919 = vmul.f32 %v508, 0.0026041667
    %v920 = vmul.f32 %v511, 0.0026041667
    %v921 = vmul.f32 %v514, 0.0026041667
    %v922 = vmul.f32 %v517, 0.0026041667
    %v923 = vmul.f32 %v520, 0.0026041667
    %v924 = vmul.f32 %v523, 0.0026041667
    %v925 = vmul.f32 %v526, 0.0026041667
    %v926 = vmul.f32 %v529, 0.0026041667
    %v927 = vmul.f32 %v532, 0.0026041667
    %v928 = vmul.f32 %v535, 0.0026041667
    %v929 = vmul.f32 %v538, 0.0026041667
    %v930 = vmul.f32 %v541, 0.0026041667
    %v931 = vmul.f32 %v544, 0.0026041667
    %v932 = vmul.f32 %v547, 0.0026041667
    %v933 = vmul.f32 %v550, 0.0026041667
    %v934 = vmul.f32 %v553, 0.0026041667
    %v935 = vmul.f32 %v556, 0.0026041667
    %v936 = vmul.f32 %v559, 0.0026041667
    %v937 = vmul.f32 %v838, 0.0026041667
    %v938 = vmul.f32 %v841, 0.0026041667
    %v939 = vmul.f32 %v844, 0.0026041667
    %v940 = vmul.f32 %v847, 0.0026041667
    %v941 = vmul.f32 %v850, 0.0026041667
    %v942 = vmul.f32 %v853, 0.0026041667
    %v943 = vmul.f32 %v856, 0.0026041667
    %v944 = vmul.f32 %v859, 0.0026041667
    %v945 = vmul.f32 %v862, 0.0026041667
    %v946 = vmul.f32 %v865, 0.0026041667
    %v947 = vmul.f32 %v868, 0.0026041667
    %v948 = vmul.f32 %v871, 0.0026041667
    %v949 = vmul.f32 %v874, 0.0026041667
    %v950 = vmul.f32 %v877, 0.0026041667
    %v951 = vmul.f32 %v880, 0.0026041667
    %v952 = vmul.f32 %v883, 0.0026041667
    %v953 = vmul.f32 %v886, 0.0026041667
    %v954 = vmul.f32 %v889, 0.0026041667
    %v955 = vmul.f32 %v892, 0.0026041667
    %v956 = vmul.f32 %v895, 0.0026041667
    %v957 = vmul.f32 %v898, 0.0026041667
    %v958 = vmul.f32 %v901, 0.0026041667
    %v959 = vmul.f32 %v904, 0.0026041667
    %v960 = vmul.f32 %v907, 0.0026041667
    %v961 = vmul.f32 %v910, 0.0026041667
    %v962 = vmul.f32 %v912, %v912
    %v963 = vmul.f32 %v913, %v913
    %v964 = vmul.f32 %v914, %v914
    %v965 = vmul.f32 %v915, %v915
    %v966 = vmul.f32 %v916, %v916
    %v967 = vmul.f32 %v917, %v917
    %v968 = vmul.f32 %v918, %v918
    %v969 = vmul.f32 %v919, %v919
    %v970 = vmul.f32 %v920, %v920
    %v971 = vmul.f32 %v921, %v921
    %v972 = vmul.f32 %v922, %v922
    %v973 = vmul.f32 %v923, %v923
    %v974 = vmul.f32 %v924, %v924
    %v975 = vmul.f32 %v925, %v925
    %v976 = vmul.f32 %v926, %v926
    %v977 = vmul.f32 %v927, %v927
    %v978 = vmul.f32 %v928, %v928
    %v979 = vmul.f32 %v929, %v929
    %v980 = vmul.f32 %v930, %v930
    %v981 = vmul.f32 %v931, %v931
    %v982 = vmul.f32 %v932, %v932
    %v983 = vmul.f32 %v933, %v933
    %v984 = vmul.f32 %v934, %v934
    %v985 = vmul.f32 %v935, %v935
    %v986 = vmul.f32 %v936, %v936
    %v987 = vsub.f32 %v937, %v962
    %v988 = vsub.f32 %v938, %v963
    %v989 = vsub.f32 %v939, %v964
    %v990 = vsub.f32 %v940, %v965
    %v991 = vsub.f32 %v941, %v966
    %v992 = vsub.f32 %v942, %v967
    %v993 = vsub.f32 %v943, %v968
    %v994 = vsub.f32 %v944, %v969
    %v995 = vsub.f32 %v945, %v970
    %v996 = vsub.f32 %v946, %v971
    %v997 = vsub.f32 %v947, %v972
    %v998 = vsub.f32 %v948, %v973
    %v999 = vsub.f32 %v949, %v974
    %v1000 = vsub.f32 %v950, %v975
    %v1001 = vsub.f32 %v951, %v976
    %v1002 = vsub.f32 %v952, %v977
    %v1003 = vsub.f32 %v953, %v978
    %v1004 = vsub.f32 %v954, %v979
    %v1005 = vsub.f32 %v955, %v980
    %v1006 = vsub.f32 %v956, %v981
    %v1007 = vsub.f32 %v957, %v982
    %v1008 = vsub.f32 %v958, %v983
    %v1009 = vsub.f32 %v959, %v984
    %v1010 = vsub.f32 %v960, %v985
    %v1011 = vsub.f32 %v961, %v986
    %v1012 = vmax.f32 %v987, 0.0
    %v1013 = vmax.f32 %v988, 0.0
    %v1014 = vmax.f32 %v989, 0.0
    %v1015 = vmax.f32 %v990, 0.0
    %v1016 = vmax.f32 %v991, 0.0
    %v1017 = vmax.f32 %v992, 0.0
    %v1018 = vmax.f32 %v993, 0.0
    %v1019 = vmax.f32 %v994, 0.0
    %v1020 = vmax.f32 %v995, 0.0
    %v1021 = vmax.f32 %v996, 0.0
    %v1022 = vmax.f32 %v997, 0.0
    %v1023 = vmax.f32 %v998, 0.0
    %v1024 = vmax.f32 %v999, 0.0
    %v1025 = vmax.f32 %v1000, 0.0
    %v1026 = vmax.f32 %v1001, 0.0
    %v1027 = vmax.f32 %v1002, 0.0
    %v1028 = vmax.f32 %v1003, 0.0
    %v1029 = vmax.f32 %v1004, 0.0
    %v1030 = vmax.f32 %v1005, 0.0
    %v1031 = vmax.f32 %v1006, 0.0
    %v1032 = vmax.f32 %v1007, 0.0
    %v1033 = vmax.f32 %v1008, 0.0
    %v1034 = vmax.f32 %v1009, 0.0
    %v1035 = vmax.f32 %v1010, 0.0
    %v1036 = vmax.f32 %v1011, 0.0
    %v1037 = vadd.f32 %v1012, 1e-05
    %v1038 = vadd.f32 %v1013, 1e-05
    %v1039 = vadd.f32 %v1014, 1e-05
    %v1040 = vadd.f32 %v1015, 1e-05
    %v1041 = vadd.f32 %v1016, 1e-05
    %v1042 = vadd.f32 %v1017, 1e-05
    %v1043 = vadd.f32 %v1018, 1e-05
    %v1044 = vadd.f32 %v1019, 1e-05
    %v1045 = vadd.f32 %v1020, 1e-05
    %v1046 = vadd.f32 %v1021, 1e-05
    %v1047 = vadd.f32 %v1022, 1e-05
    %v1048 = vadd.f32 %v1023, 1e-05
    %v1049 = vadd.f32 %v1024, 1e-05
    %v1050 = vadd.f32 %v1025, 1e-05
    %v1051 = vadd.f32 %v1026, 1e-05
    %v1052 = vadd.f32 %v1027, 1e-05
    %v1053 = vadd.f32 %v1028, 1e-05
    %v1054 = vadd.f32 %v1029, 1e-05
    %v1055 = vadd.f32 %v1030, 1e-05
    %v1056 = vadd.f32 %v1031, 1e-05
    %v1057 = vadd.f32 %v1032, 1e-05
    %v1058 = vadd.f32 %v1033, 1e-05
    %v1059 = vadd.f32 %v1034, 1e-05
    %v1060 = vadd.f32 %v1035, 1e-05
    %v1061 = vadd.f32 %v1036, 1e-05
    %v1062 = vrsqrt.pop %v1037
    %v1063 = vmul.f32 %v1062, %v1037
    %v1064 = vmul.f32 %v1063, %v1062
    %v1065 = vmul.f32 0.5, %v1064
    %v1066 = vsub.f32 1.5, %v1065
    %v1067 = vmul.f32 %v1062, %v1066
    %vm1068 = vweird.f32 %v1037
    %vm1069 = vweird.f32 %v1062
    %vm1070 = vmor %vm1068, %vm1069
    %v1071 = vsel %vm1070, %v1062, %v1067
    %v1072 = vrsqrt.pop %v1038
    %v1073 = vmul.f32 %v1072, %v1038
    %v1074 = vmul.f32 %v1073, %v1072
    %v1075 = vmul.f32 0.5, %v1074
    %v1076 = vsub.f32 1.5, %v1075
    %v1077 = vmul.f32 %v1072, %v1076
    %vm1078 = vweird.f32 %v1038
    %vm1079 = vweird.f32 %v1072
    %vm1080 = vmor %vm1078, %vm1079
    %v1081 = vsel %vm1080, %v1072, %v1077
    %v1082 = vrsqrt.pop %v1039
    %v1083 = vmul.f32 %v1082, %v1039
    %v1084 = vmul.f32 %v1083, %v1082
    %v1085 = vmul.f32 0.5, %v1084
    %v1086 = vsub.f32 1.5, %v1085
    %v1087 = vmul.f32 %v1082, %v1086
    %vm1088 = vweird.f32 %v1039
    %vm1089 = vweird.f32 %v1082
    %vm1090 = vmor %vm1088, %vm1089
    %v1091 = vsel %vm1090, %v1082, %v1087
    %v1092 = vrsqrt.pop %v1040
    %v1093 = vmul.f32 %v1092, %v1040
    %v1094 = vmul.f32 %v1093, %v1092
    %v1095 = vmul.f32 0.5, %v1094
    %v1096 = vsub.f32 1.5, %v1095
    %v1097 = vmul.f32 %v1092, %v1096
    %vm1098 = vweird.f32 %v1040
    %vm1099 = vweird.f32 %v1092
    %vm1100 = vmor %vm1098, %vm1099
    %v1101 = vsel %vm1100, %v1092, %v1097
    %v1102 = vrsqrt.pop %v1041
    %v1103 = vmul.f32 %v1102, %v1041
    %v1104 = vmul.f32 %v1103, %v1102
    %v1105 = vmul.f32 0.5, %v1104
    %v1106 = vsub.f32 1.5, %v1105
    %v1107 = vmul.f32 %v1102, %v1106
    %vm1108 = vweird.f32 %v1041
    %vm1109 = vweird.f32 %v1102
    %vm1110 = vmor %vm1108, %vm1109
    %v1111 = vsel %vm1110, %v1102, %v1107
    %v1112 = vrsqrt.pop %v1042
    %v1113 = vmul.f32 %v1112, %v1042
    %v1114 = vmul.f32 %v1113, %v1112
    %v1115 = vmul.f32 0.5, %v1114
    %v1116 = vsub.f32 1.5, %v1115
    %v1117 = vmul.f32 %v1112, %v1116
    %vm1118 = vweird.f32 %v1042
    %vm1119 = vweird.f32 %v1112
    %vm1120 = vmor %vm1118, %vm1119
    %v1121 = vsel %vm1120, %v1112, %v1117
    %v1122 = vrsqrt.pop %v1043
    %v1123 = vmul.f32 %v1122, %v1043
    %v1124 = vmul.f32 %v1123, %v1122
    %v1125 = vmul.f32 0.5, %v1124
    %v1126 = vsub.f32 1.5, %v1125
    %v1127 = vmul.f32 %v1122, %v1126
    %vm1128 = vweird.f32 %v1043
    %vm1129 = vweird.f32 %v1122
    %vm1130 = vmor %vm1128, %vm1129
    %v1131 = vsel %vm1130, %v1122, %v1127
    %v1132 = vrsqrt.pop %v1044
    %v1133 = vmul.f32 %v1132, %v1044
    %v1134 = vmul.f32 %v1133, %v1132
    %v1135 = vmul.f32 0.5, %v1134
    %v1136 = vsub.f32 1.5, %v1135
    %v1137 = vmul.f32 %v1132, %v1136
    %vm1138 = vweird.f32 %v1044
    %vm1139 = vweird.f32 %v1132
    %vm1140 = vmor %vm1138, %vm1139
    %v1141 = vsel %vm1140, %v1132, %v1137
    %v1142 = vrsqrt.pop %v1045
    %v1143 = vmul.f32 %v1142, %v1045
    %v1144 = vmul.f32 %v1143, %v1142
    %v1145 = vmul.f32 0.5, %v1144
    %v1146 = vsub.f32 1.5, %v1145
    %v1147 = vmul.f32 %v1142, %v1146
    %vm1148 = vweird.f32 %v1045
    %vm1149 = vweird.f32 %v1142
    %vm1150 = vmor %vm1148, %vm1149
    %v1151 = vsel %vm1150, %v1142, %v1147
    %v1152 = vrsqrt.pop %v1046
    %v1153 = vmul.f32 %v1152, %v1046
    %v1154 = vmul.f32 %v1153, %v1152
    %v1155 = vmul.f32 0.5, %v1154
    %v1156 = vsub.f32 1.5, %v1155
    %v1157 = vmul.f32 %v1152, %v1156
    %vm1158 = vweird.f32 %v1046
    %vm1159 = vweird.f32 %v1152
    %vm1160 = vmor %vm1158, %vm1159
    %v1161 = vsel %vm1160, %v1152, %v1157
    %v1162 = vrsqrt.pop %v1047
    %v1163 = vmul.f32 %v1162, %v1047
    %v1164 = vmul.f32 %v1163, %v1162
    %v1165 = vmul.f32 0.5, %v1164
    %v1166 = vsub.f32 1.5, %v1165
    %v1167 = vmul.f32 %v1162, %v1166
    %vm1168 = vweird.f32 %v1047
    %vm1169 = vweird.f32 %v1162
    %vm1170 = vmor %vm1168, %vm1169
    %v1171 = vsel %vm1170, %v1162, %v1167
    %v1172 = vrsqrt.pop %v1048
    %v1173 = vmul.f32 %v1172, %v1048
    %v1174 = vmul.f32 %v1173, %v1172
    %v1175 = vmul.f32 0.5, %v1174
    %v1176 = vsub.f32 1.5, %v1175
    %v1177 = vmul.f32 %v1172, %v1176
    %vm1178 = vweird.f32 %v1048
    %vm1179 = vweird.f32 %v1172
    %vm1180 = vmor %vm1178, %vm1179
    %v1181 = vsel %vm1180, %v1172, %v1177
    %v1182 = vrsqrt.pop %v1049
    %v1183 = vmul.f32 %v1182, %v1049
    %v1184 = vmul.f32 %v1183, %v1182
    %v1185 = vmul.f32 0.5, %v1184
    %v1186 = vsub.f32 1.5, %v1185
    %v1187 = vmul.f32 %v1182, %v1186
    %vm1188 = vweird.f32 %v1049
    %vm1189 = vweird.f32 %v1182
    %vm1190 = vmor %vm1188, %vm1189
    %v1191 = vsel %vm1190, %v1182, %v1187
    %v1192 = vrsqrt.pop %v1050
    %v1193 = vmul.f32 %v1192, %v1050
    %v1194 = vmul.f32 %v1193, %v1192
    %v1195 = vmul.f32 0.5, %v1194
    %v1196 = vsub.f32 1.5, %v1195
    %v1197 = vmul.f32 %v1192, %v1196
    %vm1198 = vweird.f32 %v1050
    %vm1199 = vweird.f32 %v1192
    %vm1200 = vmor %vm1198, %vm1199
    %v1201 = vsel %vm1200, %v1192, %v1197
    %v1202 = vrsqrt.pop %v1051
    %v1203 = vmul.f32 %v1202, %v1051
    %v1204 = vmul.f32 %v1203, %v1202
    %v1205 = vmul.f32 0.5, %v1204
    %v1206 = vsub.f32 1.5, %v1205
    %v1207 = vmul.f32 %v1202, %v1206
    %vm1208 = vweird.f32 %v1051
    %vm1209 = vweird.f32 %v1202
    %vm1210 = vmor %vm1208, %vm1209
    %v1211 = vsel %vm1210, %v1202, %v1207
    %v1212 = vrsqrt.pop %v1052
    %v1213 = vmul.f32 %v1212, %v1052
    %v1214 = vmul.f32 %v1213, %v1212
    %v1215 = vmul.f32 0.5, %v1214
    %v1216 = vsub.f32 1.5, %v1215
    %v1217 = vmul.f32 %v1212, %v1216
    %vm1218 = vweird.f32 %v1052
    %vm1219 = vweird.f32 %v1212
    %vm1220 = vmor %vm1218, %vm1219
    %v1221 = vsel %vm1220, %v1212, %v1217
    %v1222 = vrsqrt.pop %v1053
    %v1223 = vmul.f32 %v1222, %v1053
    %v1224 = vmul.f32 %v1223, %v1222
    %v1225 = vmul.f32 0.5, %v1224
    %v1226 = vsub.f32 1.5, %v1225
    %v1227 = vmul.f32 %v1222, %v1226
    %vm1228 = vweird.f32 %v1053
    %vm1229 = vweird.f32 %v1222
    %vm1230 = vmor %vm1228, %vm1229
    %v1231 = vsel %vm1230, %v1222, %v1227
    %v1232 = vrsqrt.pop %v1054
    %v1233 = vmul.f32 %v1232, %v1054
    %v1234 = vmul.f32 %v1233, %v1232
    %v1235 = vmul.f32 0.5, %v1234
    %v1236 = vsub.f32 1.5, %v1235
    %v1237 = vmul.f32 %v1232, %v1236
    %vm1238 = vweird.f32 %v1054
    %vm1239 = vweird.f32 %v1232
    %vm1240 = vmor %vm1238, %vm1239
    %v1241 = vsel %vm1240, %v1232, %v1237
    %v1242 = vrsqrt.pop %v1055
    %v1243 = vmul.f32 %v1242, %v1055
    %v1244 = vmul.f32 %v1243, %v1242
    %v1245 = vmul.f32 0.5, %v1244
    %v1246 = vsub.f32 1.5, %v1245
    %v1247 = vmul.f32 %v1242, %v1246
    %vm1248 = vweird.f32 %v1055
    %vm1249 = vweird.f32 %v1242
    %vm1250 = vmor %vm1248, %vm1249
    %v1251 = vsel %vm1250, %v1242, %v1247
    %v1252 = vrsqrt.pop %v1056
    %v1253 = vmul.f32 %v1252, %v1056
    %v1254 = vmul.f32 %v1253, %v1252
    %v1255 = vmul.f32 0.5, %v1254
    %v1256 = vsub.f32 1.5, %v1255
    %v1257 = vmul.f32 %v1252, %v1256
    %vm1258 = vweird.f32 %v1056
    %vm1259 = vweird.f32 %v1252
    %vm1260 = vmor %vm1258, %vm1259
    %v1261 = vsel %vm1260, %v1252, %v1257
    %v1262 = vrsqrt.pop %v1057
    %v1263 = vmul.f32 %v1262, %v1057
    %v1264 = vmul.f32 %v1263, %v1262
    %v1265 = vmul.f32 0.5, %v1264
    %v1266 = vsub.f32 1.5, %v1265
    %v1267 = vmul.f32 %v1262, %v1266
    %vm1268 = vweird.f32 %v1057
    %vm1269 = vweird.f32 %v1262
    %vm1270 = vmor %vm1268, %vm1269
    %v1271 = vsel %vm1270, %v1262, %v1267
    %v1272 = vrsqrt.pop %v1058
    %v1273 = vmul.f32 %v1272, %v1058
    %v1274 = vmul.f32 %v1273, %v1272
    %v1275 = vmul.f32 0.5, %v1274
    %v1276 = vsub.f32 1.5, %v1275
    %v1277 = vmul.f32 %v1272, %v1276
    %vm1278 = vweird.f32 %v1058
    %vm1279 = vweird.f32 %v1272
    %vm1280 = vmor %vm1278, %vm1279
    %v1281 = vsel %vm1280, %v1272, %v1277
    %v1282 = vrsqrt.pop %v1059
    %v1283 = vmul.f32 %v1282, %v1059
    %v1284 = vmul.f32 %v1283, %v1282
    %v1285 = vmul.f32 0.5, %v1284
    %v1286 = vsub.f32 1.5, %v1285
    %v1287 = vmul.f32 %v1282, %v1286
    %vm1288 = vweird.f32 %v1059
    %vm1289 = vweird.f32 %v1282
    %vm1290 = vmor %vm1288, %vm1289
    %v1291 = vsel %vm1290, %v1282, %v1287
    %v1292 = vrsqrt.pop %v1060
    %v1293 = vmul.f32 %v1292, %v1060
    %v1294 = vmul.f32 %v1293, %v1292
    %v1295 = vmul.f32 0.5, %v1294
    %v1296 = vsub.f32 1.5, %v1295
    %v1297 = vmul.f32 %v1292, %v1296
    %vm1298 = vweird.f32 %v1060
    %vm1299 = vweird.f32 %v1292
    %vm1300 = vmor %vm1298, %vm1299
    %v1301 = vsel %vm1300, %v1292, %v1297
    %v1302 = vrsqrt.pop %v1061
    %v1303 = vmul.f32 %v1302, %v1061
    %v1304 = vmul.f32 %v1303, %v1302
    %v1305 = vmul.f32 0.5, %v1304
    %v1306 = vsub.f32 1.5, %v1305
    %v1307 = vmul.f32 %v1302, %v1306
    %vm1308 = vweird.f32 %v1061
    %vm1309 = vweird.f32 %v1302
    %vm1310 = vmor %vm1308, %vm1309
    %v1311 = vsel %vm1310, %v1302, %v1307
    %v1312 = vld [vmem:[#allocation7] sm:$0x3f]
    %1314 = vset.pattern.permute.xlu0 0
    %1315 = vperm.xlu0 %1314, %v912
    %v1316 = vpop.permute.xlu0 %1315
    %1319 = vset.pattern.permute.xlu0 0
    %1320 = vperm.xlu0 %1319, %v913
    %v1321 = vpop.permute.xlu0 %1320
    %1324 = vset.pattern.permute.xlu0 0
    %1325 = vperm.xlu0 %1324, %v914
    %v1326 = vpop.permute.xlu0 %1325
    %1329 = vset.pattern.permute.xlu0 0
    %1330 = vperm.xlu0 %1329, %v915
    %v1331 = vpop.permute.xlu0 %1330
    %1334 = vset.pattern.permute.xlu0 0
    %1335 = vperm.xlu0 %1334, %v916
    %v1336 = vpop.permute.xlu0 %1335
    %1339 = vset.pattern.permute.xlu0 0
    %1340 = vperm.xlu0 %1339, %v917
    %v1341 = vpop.permute.xlu0 %1340
    %1344 = vset.pattern.permute.xlu0 0
    %1345 = vperm.xlu0 %1344, %v918
    %v1346 = vpop.permute.xlu0 %1345
    %1349 = vset.pattern.permute.xlu0 0
    %1350 = vperm.xlu0 %1349, %v919
    %v1351 = vpop.permute.xlu0 %1350
    %1354 = vset.pattern.permute.xlu0 0
    %1355 = vperm.xlu0 %1354, %v920
    %v1356 = vpop.permute.xlu0 %1355
    %1359 = vset.pattern.permute.xlu0 0
    %1360 = vperm.xlu0 %1359, %v921
    %v1361 = vpop.permute.xlu0 %1360
    %1364 = vset.pattern.permute.xlu0 0
    %1365 = vperm.xlu0 %1364, %v922
    %v1366 = vpop.permute.xlu0 %1365
    %1369 = vset.pattern.permute.xlu0 0
    %1370 = vperm.xlu0 %1369, %v923
    %v1371 = vpop.permute.xlu0 %1370
    %1374 = vset.pattern.permute.xlu0 0
    %1375 = vperm.xlu0 %1374, %v924
    %v1376 = vpop.permute.xlu0 %1375
    %1379 = vset.pattern.permute.xlu0 0
    %1380 = vperm.xlu0 %1379, %v925
    %v1381 = vpop.permute.xlu0 %1380
    %1384 = vset.pattern.permute.xlu0 0
    %1385 = vperm.xlu0 %1384, %v926
    %v1386 = vpop.permute.xlu0 %1385
    %1389 = vset.pattern.permute.xlu0 0
    %1390 = vperm.xlu0 %1389, %v927
    %v1391 = vpop.permute.xlu0 %1390
    %1394 = vset.pattern.permute.xlu0 0
    %1395 = vperm.xlu0 %1394, %v928
    %v1396 = vpop.permute.xlu0 %1395
    %1399 = vset.pattern.permute.xlu0 0
    %1400 = vperm.xlu0 %1399, %v929
    %v1401 = vpop.permute.xlu0 %1400
    %1404 = vset.pattern.permute.xlu0 0
    %1405 = vperm.xlu0 %1404, %v930
    %v1406 = vpop.permute.xlu0 %1405
    %1409 = vset.pattern.permute.xlu0 0
    %1410 = vperm.xlu0 %1409, %v931
    %v1411 = vpop.permute.xlu0 %1410
    %1414 = vset.pattern.permute.xlu0 0
    %1415 = vperm.xlu0 %1414, %v932
    %v1416 = vpop.permute.xlu0 %1415
    %1419 = vset.pattern.permute.xlu0 0
    %1420 = vperm.xlu0 %1419, %v933
    %v1421 = vpop.permute.xlu0 %1420
    %1424 = vset.pattern.permute.xlu0 0
    %1425 = vperm.xlu0 %1424, %v934
    %v1426 = vpop.permute.xlu0 %1425
    %1429 = vset.pattern.permute.xlu0 0
    %1430 = vperm.xlu0 %1429, %v935
    %v1431 = vpop.permute.xlu0 %1430
    %1434 = vset.pattern.permute.xlu0 0
    %1435 = vperm.xlu0 %1434, %v936
    %v1436 = vpop.permute.xlu0 %1435
    %v1438 = vsub.f32 %v210, %v1316
    %v1439 = vsub.f32 %v211, %v1316
    %v1440 = vsub.f32 %v212, %v1316
    %v1441 = vsub.f32 %v213, %v1321
    %v1442 = vsub.f32 %v214, %v1321
    %v1443 = vsub.f32 %v215, %v1321
    %v1444 = vsub.f32 %v216, %v1326
    %v1445 = vsub.f32 %v217, %v1326
    %v1446 = vsub.f32 %v218, %v1326
    %v1447 = vsub.f32 %v219, %v1331
    %v1448 = vsub.f32 %v220, %v1331
    %v1449 = vsub.f32 %v221, %v1331
    %v1450 = vsub.f32 %v222, %v1336
    %v1451 = vsub.f32 %v223, %v1336
    %v1452 = vsub.f32 %v224, %v1336
    %v1453 = vsub.f32 %v225, %v1341
    %v1454 = vsub.f32 %v226, %v1341
    %v1455 = vsub.f32 %v227, %v1341
    %v1456 = vsub.f32 %v228, %v1346
    %v1457 = vsub.f32 %v229, %v1346
    %v1458 = vsub.f32 %v230, %v1346
    %v1459 = vsub.f32 %v231, %v1351
    %v1460 = vsub.f32 %v232, %v1351
    %v1461 = vsub.f32 %v233, %v1351
    %v1462 = vsub.f32 %v234, %v1356
    %v1463 = vsub.f32 %v235, %v1356
    %v1464 = vsub.f32 %v236, %v1356
    %v1465 = vsub.f32 %v237, %v1361
    %v1466 = vsub.f32 %v238, %v1361
    %v1467 = vsub.f32 %v239, %v1361
    %v1468 = vsub.f32 %v240, %v1366
    %v1469 = vsub.f32 %v241, %v1366
    %v1470 = vsub.f32 %v242, %v1366
    %v1471 = vsub.f32 %v243, %v1371
    %v1472 = vsub.f32 %v244, %v1371
    %v1473 = vsub.f32 %v245, %v1371
    %v1474 = vsub.f32 %v246, %v1376
    %v1475 = vsub.f32 %v247, %v1376
    %v1476 = vsub.f32 %v248, %v1376
    %v1477 = vsub.f32 %v249, %v1381
    %v1478 = vsub.f32 %v250, %v1381
    %v1479 = vsub.f32 %v251, %v1381
    %v1480 = vsub.f32 %v252, %v1386
    %v1481 = vsub.f32 %v253, %v1386
    %v1482 = vsub.f32 %v254, %v1386
    %v1483 = vsub.f32 %v255, %v1391
    %v1484 = vsub.f32 %v256, %v1391
    %v1485 = vsub.f32 %v257, %v1391
    %v1486 = vsub.f32 %v258, %v1396
    %v1487 = vsub.f32 %v259, %v1396
    %v1488 = vsub.f32 %v260, %v1396
    %v1489 = vsub.f32 %v261, %v1401
    %v1490 = vsub.f32 %v262, %v1401
    %v1491 = vsub.f32 %v263, %v1401
    %v1492 = vsub.f32 %v264, %v1406
    %v1493 = vsub.f32 %v265, %v1406
    %v1494 = vsub.f32 %v266, %v1406
    %v1495 = vsub.f32 %v267, %v1411
    %v1496 = vsub.f32 %v268, %v1411
    %v1497 = vsub.f32 %v269, %v1411
    %v1498 = vsub.f32 %v270, %v1416
    %v1499 = vsub.f32 %v271, %v1416
    %v1500 = vsub.f32 %v272, %v1416
    %v1501 = vsub.f32 %v273, %v1421
    %v1502 = vsub.f32 %v274, %v1421
    %v1503 = vsub.f32 %v275, %v1421
    %v1504 = vsub.f32 %v276, %v1426
    %v1505 = vsub.f32 %v277, %v1426
    %v1506 = vsub.f32 %v278, %v1426
    %v1507 = vsub.f32 %v279, %v1431
    %v1508 = vsub.f32 %v280, %v1431
    %v1509 = vsub.f32 %v281, %v1431
    %v1510 = vsub.f32 %v282, %v1436
    %v1511 = vsub.f32 %v283, %v1436
    %v1512 = vsub.f32 %v284, %v1436
    %1514 = vset.pattern.permute.xlu0 0
    %1515 = vperm.xlu0 %1514, %v1071
    %v1516 = vpop.permute.xlu0 %1515
    %1519 = vset.pattern.permute.xlu0 0
    %1520 = vperm.xlu0 %1519, %v1081
    %v1521 = vpop.permute.xlu0 %1520
    %1524 = vset.pattern.permute.xlu0 0
    %1525 = vperm.xlu0 %1524, %v1091
    %v1526 = vpop.permute.xlu0 %1525
    %1529 = vset.pattern.permute.xlu0 0
    %1530 = vperm.xlu0 %1529, %v1101
    %v1531 = vpop.permute.xlu0 %1530
    %1534 = vset.pattern.permute.xlu0 0
    %1535 = vperm.xlu0 %1534, %v1111
    %v1536 = vpop.permute.xlu0 %1535
    %1539 = vset.pattern.permute.xlu0 0
    %1540 = vperm.xlu0 %1539, %v1121
    %v1541 = vpop.permute.xlu0 %1540
    %1544 = vset.pattern.permute.xlu0 0
    %1545 = vperm.xlu0 %1544, %v1131
    %v1546 = vpop.permute.xlu0 %1545
    %1549 = vset.pattern.permute.xlu0 0
    %1550 = vperm.xlu0 %1549, %v1141
    %v1551 = vpop.permute.xlu0 %1550
    %1554 = vset.pattern.permute.xlu0 0
    %1555 = vperm.xlu0 %1554, %v1151
    %v1556 = vpop.permute.xlu0 %1555
    %1559 = vset.pattern.permute.xlu0 0
    %1560 = vperm.xlu0 %1559, %v1161
    %v1561 = vpop.permute.xlu0 %1560
    %1564 = vset.pattern.permute.xlu0 0
    %1565 = vperm.xlu0 %1564, %v1171
    %v1566 = vpop.permute.xlu0 %1565
    %1569 = vset.pattern.permute.xlu0 0
    %1570 = vperm.xlu0 %1569, %v1181
    %v1571 = vpop.permute.xlu0 %1570
    %1574 = vset.pattern.permute.xlu0 0
    %1575 = vperm.xlu0 %1574, %v1191
    %v1576 = vpop.permute.xlu0 %1575
    %1579 = vset.pattern.permute.xlu0 0
    %1580 = vperm.xlu0 %1579, %v1201
    %v1581 = vpop.permute.xlu0 %1580
    %1584 = vset.pattern.permute.xlu0 0
    %1585 = vperm.xlu0 %1584, %v1211
    %v1586 = vpop.permute.xlu0 %1585
    %1589 = vset.pattern.permute.xlu0 0
    %1590 = vperm.xlu0 %1589, %v1221
    %v1591 = vpop.permute.xlu0 %1590
    %1594 = vset.pattern.permute.xlu0 0
    %1595 = vperm.xlu0 %1594, %v1231
    %v1596 = vpop.permute.xlu0 %1595
    %1599 = vset.pattern.permute.xlu0 0
    %1600 = vperm.xlu0 %1599, %v1241
    %v1601 = vpop.permute.xlu0 %1600
    %1604 = vset.pattern.permute.xlu0 0
    %1605 = vperm.xlu0 %1604, %v1251
    %v1606 = vpop.permute.xlu0 %1605
    %1609 = vset.pattern.permute.xlu0 0
    %1610 = vperm.xlu0 %1609, %v1261
    %v1611 = vpop.permute.xlu0 %1610
    %1614 = vset.pattern.permute.xlu0 0
    %1615 = vperm.xlu0 %1614, %v1271
    %v1616 = vpop.permute.xlu0 %1615
    %1619 = vset.pattern.permute.xlu0 0
    %1620 = vperm.xlu0 %1619, %v1281
    %v1621 = vpop.permute.xlu0 %1620
    %1624 = vset.pattern.permute.xlu0 0
    %1625 = vperm.xlu0 %1624, %v1291
    %v1626 = vpop.permute.xlu0 %1625
    %1629 = vset.pattern.permute.xlu0 0
    %1630 = vperm.xlu0 %1629, %v1301
    %v1631 = vpop.permute.xlu0 %1630
    %1634 = vset.pattern.permute.xlu0 0
    %1635 = vperm.xlu0 %1634, %v1311
    %v1636 = vpop.permute.xlu0 %1635
    %v1638 = vmul.f32 %v1438, %v1516
    %v1639 = vmul.f32 %v1439, %v1516
    %v1640 = vmul.f32 %v1440, %v1516
    %v1641 = vmul.f32 %v1441, %v1521
    %v1642 = vmul.f32 %v1442, %v1521
    %v1643 = vmul.f32 %v1443, %v1521
    %v1644 = vmul.f32 %v1444, %v1526
    %v1645 = vmul.f32 %v1445, %v1526
    %v1646 = vmul.f32 %v1446, %v1526
    %v1647 = vmul.f32 %v1447, %v1531
    %v1648 = vmul.f32 %v1448, %v1531
    %v1649 = vmul.f32 %v1449, %v1531
    %v1650 = vmul.f32 %v1450, %v1536
    %v1651 = vmul.f32 %v1451, %v1536
    %v1652 = vmul.f32 %v1452, %v1536
    %v1653 = vmul.f32 %v1453, %v1541
    %v1654 = vmul.f32 %v1454, %v1541
    %v1655 = vmul.f32 %v1455, %v1541
    %v1656 = vmul.f32 %v1456, %v1546
    %v1657 = vmul.f32 %v1457, %v1546
    %v1658 = vmul.f32 %v1458, %v1546
    %v1659 = vmul.f32 %v1459, %v1551
    %v1660 = vmul.f32 %v1460, %v1551
    %v1661 = vmul.f32 %v1461, %v1551
    %v1662 = vmul.f32 %v1462, %v1556
    %v1663 = vmul.f32 %v1463, %v1556
    %v1664 = vmul.f32 %v1464, %v1556
    %v1665 = vmul.f32 %v1465, %v1561
    %v1666 = vmul.f32 %v1466, %v1561
    %v1667 = vmul.f32 %v1467, %v1561
    %v1668 = vmul.f32 %v1468, %v1566
    %v1669 = vmul.f32 %v1469, %v1566
    %v1670 = vmul.f32 %v1470, %v1566
    %v1671 = vmul.f32 %v1471, %v1571
    %v1672 = vmul.f32 %v1472, %v1571
    %v1673 = vmul.f32 %v1473, %v1571
    %v1674 = vmul.f32 %v1474, %v1576
    %v1675 = vmul.f32 %v1475, %v1576
    %v1676 = vmul.f32 %v1476, %v1576
    %v1677 = vmul.f32 %v1477, %v1581
    %v1678 = vmul.f32 %v1478, %v1581
    %v1679 = vmul.f32 %v1479, %v1581
    %v1680 = vmul.f32 %v1480, %v1586
    %v1681 = vmul.f32 %v1481, %v1586
    %v1682 = vmul.f32 %v1482, %v1586
    %v1683 = vmul.f32 %v1483, %v1591
    %v1684 = vmul.f32 %v1484, %v1591
    %v1685 = vmul.f32 %v1485, %v1591
    %v1686 = vmul.f32 %v1486, %v1596
    %v1687 = vmul.f32 %v1487, %v1596
    %v1688 = vmul.f32 %v1488, %v1596
    %v1689 = vmul.f32 %v1489, %v1601
    %v1690 = vmul.f32 %v1490, %v1601
    %v1691 = vmul.f32 %v1491, %v1601
    %v1692 = vmul.f32 %v1492, %v1606
    %v1693 = vmul.f32 %v1493, %v1606
    %v1694 = vmul.f32 %v1494, %v1606
    %v1695 = vmul.f32 %v1495, %v1611
    %v1696 = vmul.f32 %v1496, %v1611
    %v1697 = vmul.f32 %v1497, %v1611
    %v1698 = vmul.f32 %v1498, %v1616
    %v1699 = vmul.f32 %v1499, %v1616
    %v1700 = vmul.f32 %v1500, %v1616
    %v1701 = vmul.f32 %v1501, %v1621
    %v1702 = vmul.f32 %v1502, %v1621
    %v1703 = vmul.f32 %v1503, %v1621
    %v1704 = vmul.f32 %v1504, %v1626
    %v1705 = vmul.f32 %v1505, %v1626
    %v1706 = vmul.f32 %v1506, %v1626
    %v1707 = vmul.f32 %v1507, %v1631
    %v1708 = vmul.f32 %v1508, %v1631
    %v1709 = vmul.f32 %v1509, %v1631
    %v1710 = vmul.f32 %v1510, %v1636
    %v1711 = vmul.f32 %v1511, %v1636
    %v1712 = vmul.f32 %v1512, %v1636
    %v1714 = vperm.slane %v1312, 0
    %v1715 = vperm.slane %v1312, 2
    %v1716 = vperm.slane %v1312, 4
    %v1720 = vperm.slane %v1714, 0
    %v1721 = vperm.slane %v1715, 0
    %v1722 = vperm.slane %v1716, 0
    %v1723 = vmul.f32 %v1638, %v1720
    %v1724 = vmul.f32 %v1639, %v1721
    %v1725 = vmul.f32 %v1640, %v1722
    %v1726 = vmul.f32 %v1641, %v1720
    %v1727 = vmul.f32 %v1642, %v1721
    %v1728 = vmul.f32 %v1643, %v1722
    %v1729 = vmul.f32 %v1644, %v1720
    %v1730 = vmul.f32 %v1645, %v1721
    %v1731 = vmul.f32 %v1646, %v1722
    %v1732 = vmul.f32 %v1647, %v1720
    %v1733 = vmul.f32 %v1648, %v1721
    %v1734 = vmul.f32 %v1649, %v1722
    %v1735 = vmul.f32 %v1650, %v1720
    %v1736 = vmul.f32 %v1651, %v1721
    %v1737 = vmul.f32 %v1652, %v1722
    %v1738 = vmul.f32 %v1653, %v1720
    %v1739 = vmul.f32 %v1654, %v1721
    %v1740 = vmul.f32 %v1655, %v1722
    %v1741 = vmul.f32 %v1656, %v1720
    %v1742 = vmul.f32 %v1657, %v1721
    %v1743 = vmul.f32 %v1658, %v1722
    %v1744 = vmul.f32 %v1659, %v1720
    %v1745 = vmul.f32 %v1660, %v1721
    %v1746 = vmul.f32 %v1661, %v1722
    %v1747 = vmul.f32 %v1662, %v1720
    %v1748 = vmul.f32 %v1663, %v1721
    %v1749 = vmul.f32 %v1664, %v1722
    %v1750 = vmul.f32 %v1665, %v1720
    %v1751 = vmul.f32 %v1666, %v1721
    %v1752 = vmul.f32 %v1667, %v1722
    %v1753 = vmul.f32 %v1668, %v1720
    %v1754 = vmul.f32 %v1669, %v1721
    %v1755 = vmul.f32 %v1670, %v1722
    %v1756 = vmul.f32 %v1671, %v1720
    %v1757 = vmul.f32 %v1672, %v1721
    %v1758 = vmul.f32 %v1673, %v1722
    %v1759 = vmul.f32 %v1674, %v1720
    %v1760 = vmul.f32 %v1675, %v1721
    %v1761 = vmul.f32 %v1676, %v1722
    %v1762 = vmul.f32 %v1677, %v1720
    %v1763 = vmul.f32 %v1678, %v1721
    %v1764 = vmul.f32 %v1679, %v1722
    %v1765 = vmul.f32 %v1680, %v1720
    %v1766 = vmul.f32 %v1681, %v1721
    %v1767 = vmul.f32 %v1682, %v1722
    %v1768 = vmul.f32 %v1683, %v1720
    %v1769 = vmul.f32 %v1684, %v1721
    %v1770 = vmul.f32 %v1685, %v1722
    %v1771 = vmul.f32 %v1686, %v1720
    %v1772 = vmul.f32 %v1687, %v1721
    %v1773 = vmul.f32 %v1688, %v1722
    %v1774 = vmul.f32 %v1689, %v1720
    %v1775 = vmul.f32 %v1690, %v1721
    %v1776 = vmul.f32 %v1691, %v1722
    %v1777 = vmul.f32 %v1692, %v1720
    %v1778 = vmul.f32 %v1693, %v1721
    %v1779 = vmul.f32 %v1694, %v1722
    %v1780 = vmul.f32 %v1695, %v1720
    %v1781 = vmul.f32 %v1696, %v1721
    %v1782 = vmul.f32 %v1697, %v1722
    %v1783 = vmul.f32 %v1698, %v1720
    %v1784 = vmul.f32 %v1699, %v1721
    %v1785 = vmul.f32 %v1700, %v1722
    %v1786 = vmul.f32 %v1701, %v1720
    %v1787 = vmul.f32 %v1702, %v1721
    %v1788 = vmul.f32 %v1703, %v1722
    %v1789 = vmul.f32 %v1704, %v1720
    %v1790 = vmul.f32 %v1705, %v1721
    %v1791 = vmul.f32 %v1706, %v1722
    %v1792 = vmul.f32 %v1707, %v1720
    %v1793 = vmul.f32 %v1708, %v1721
    %v1794 = vmul.f32 %v1709, %v1722
    %v1795 = vmul.f32 %v1710, %v1720
    %v1796 = vmul.f32 %v1711, %v1721
    %v1797 = vmul.f32 %v1712, %v1722
    %v1798 = vperm.slane %v1312, 1
    %v1799 = vperm.slane %v1312, 3
    %v1800 = vperm.slane %v1312, 5
    %v1804 = vperm.slane %v1798, 1
    %v1805 = vperm.slane %v1799, 1
    %v1806 = vperm.slane %v1800, 1
    %v1807 = vadd.f32 %v1723, %v1804
    %v1808 = vadd.f32 %v1724, %v1805
    %v1809 = vadd.f32 %v1725, %v1806
    %v1810 = vadd.f32 %v1726, %v1804
    %v1811 = vadd.f32 %v1727, %v1805
    %v1812 = vadd.f32 %v1728, %v1806
    %v1813 = vadd.f32 %v1729, %v1804
    %v1814 = vadd.f32 %v1730, %v1805
    %v1815 = vadd.f32 %v1731, %v1806
    %v1816 = vadd.f32 %v1732, %v1804
    %v1817 = vadd.f32 %v1733, %v1805
    %v1818 = vadd.f32 %v1734, %v1806
    %v1819 = vadd.f32 %v1735, %v1804
    %v1820 = vadd.f32 %v1736, %v1805
    %v1821 = vadd.f32 %v1737, %v1806
    %v1822 = vadd.f32 %v1738, %v1804
    %v1823 = vadd.f32 %v1739, %v1805
    %v1824 = vadd.f32 %v1740, %v1806
    %v1825 = vadd.f32 %v1741, %v1804
    %v1826 = vadd.f32 %v1742, %v1805
    %v1827 = vadd.f32 %v1743, %v1806
    %v1828 = vadd.f32 %v1744, %v1804
    %v1829 = vadd.f32 %v1745, %v1805
    %v1830 = vadd.f32 %v1746, %v1806
    %v1831 = vadd.f32 %v1747, %v1804
    %v1832 = vadd.f32 %v1748, %v1805
    %v1833 = vadd.f32 %v1749, %v1806
    %v1834 = vadd.f32 %v1750, %v1804
    %v1835 = vadd.f32 %v1751, %v1805
    %v1836 = vadd.f32 %v1752, %v1806
    %v1837 = vadd.f32 %v1753, %v1804
    %v1838 = vadd.f32 %v1754, %v1805
    %v1839 = vadd.f32 %v1755, %v1806
    %v1840 = vadd.f32 %v1756, %v1804
    %v1841 = vadd.f32 %v1757, %v1805
    %v1842 = vadd.f32 %v1758, %v1806
    %v1843 = vadd.f32 %v1759, %v1804
    %v1844 = vadd.f32 %v1760, %v1805
    %v1845 = vadd.f32 %v1761, %v1806
    %v1846 = vadd.f32 %v1762, %v1804
    %v1847 = vadd.f32 %v1763, %v1805
    %v1848 = vadd.f32 %v1764, %v1806
    %v1849 = vadd.f32 %v1765, %v1804
    %v1850 = vadd.f32 %v1766, %v1805
    %v1851 = vadd.f32 %v1767, %v1806
    %v1852 = vadd.f32 %v1768, %v1804
    %v1853 = vadd.f32 %v1769, %v1805
    %v1854 = vadd.f32 %v1770, %v1806
    %v1855 = vadd.f32 %v1771, %v1804
    %v1856 = vadd.f32 %v1772, %v1805
    %v1857 = vadd.f32 %v1773, %v1806
    %v1858 = vadd.f32 %v1774, %v1804
    %v1859 = vadd.f32 %v1775, %v1805
    %v1860 = vadd.f32 %v1776, %v1806
    %v1861 = vadd.f32 %v1777, %v1804
    %v1862 = vadd.f32 %v1778, %v1805
    %v1863 = vadd.f32 %v1779, %v1806
    %v1864 = vadd.f32 %v1780, %v1804
    %v1865 = vadd.f32 %v1781, %v1805
    %v1866 = vadd.f32 %v1782, %v1806
    %v1867 = vadd.f32 %v1783, %v1804
    %v1868 = vadd.f32 %v1784, %v1805
    %v1869 = vadd.f32 %v1785, %v1806
    %v1870 = vadd.f32 %v1786, %v1804
    %v1871 = vadd.f32 %v1787, %v1805
    %v1872 = vadd.f32 %v1788, %v1806
    %v1873 = vadd.f32 %v1789, %v1804
    %v1874 = vadd.f32 %v1790, %v1805
    %v1875 = vadd.f32 %v1791, %v1806
    %v1876 = vadd.f32 %v1792, %v1804
    %v1877 = vadd.f32 %v1793, %v1805
    %v1878 = vadd.f32 %v1794, %v1806
    %v1879 = vadd.f32 %v1795, %v1804
    %v1880 = vadd.f32 %v1796, %v1805
    %v1881 = vadd.f32 %v1797, %v1806
    %1882 = vst [vmem:[#allocation8] sm:$0xff] %v1807
    %1883 = vst [vmem:[#allocation8 + $0x8] sm:$0xff] %v1808
    %1884 = vst [vmem:[#allocation8 + $0x10] sm:$0xff] %v1809
    %1885 = vst [vmem:[#allocation8 + $0x18] sm:$0xff] %v1810
    %1886 = vst [vmem:[#allocation8 + $0x20] sm:$0xff] %v1811
    %1887 = vst [vmem:[#allocation8 + $0x28] sm:$0xff] %v1812
    %1888 = vst [vmem:[#allocation8 + $0x30] sm:$0xff] %v1813
    %1889 = vst [vmem:[#allocation8 + $0x38] sm:$0xff] %v1814
    %1890 = vst [vmem:[#allocation8 + $0x40] sm:$0xff] %v1815
    %1891 = vst [vmem:[#allocation8 + $0x48] sm:$0xff] %v1816
    %1892 = vst [vmem:[#allocation8 + $0x50] sm:$0xff] %v1817
    %1893 = vst [vmem:[#allocation8 + $0x58] sm:$0xff] %v1818
    %1894 = vst [vmem:[#allocation8 + $0x60] sm:$0xff] %v1819
    %1895 = vst [vmem:[#allocation8 + $0x68] sm:$0xff] %v1820
    %1896 = vst [vmem:[#allocation8 + $0x70] sm:$0xff] %v1821
    %1897 = vst [vmem:[#allocation8 + $0x78] sm:$0xff] %v1822
    %1898 = vst [vmem:[#allocation8 + $0x80] sm:$0xff] %v1823
    %1899 = vst [vmem:[#allocation8 + $0x88] sm:$0xff] %v1824
    %1900 = vst [vmem:[#allocation8 + $0x90] sm:$0xff] %v1825
    %1901 = vst [vmem:[#allocation8 + $0x98] sm:$0xff] %v1826
    %1902 = vst [vmem:[#allocation8 + $0xa0] sm:$0xff] %v1827
    %1903 = vst [vmem:[#allocation8 + $0xa8] sm:$0xff] %v1828
    %1904 = vst [vmem:[#allocation8 + $0xb0] sm:$0xff] %v1829
    %1905 = vst [vmem:[#allocation8 + $0xb8] sm:$0xff] %v1830
    %1906 = vst [vmem:[#allocation8 + $0xc0] sm:$0xff] %v1831
    %1907 = vst [vmem:[#allocation8 + $0xc8] sm:$0xff] %v1832
    %1908 = vst [vmem:[#allocation8 + $0xd0] sm:$0xff] %v1833
    %1909 = vst [vmem:[#allocation8 + $0xd8] sm:$0xff] %v1834
    %1910 = vst [vmem:[#allocation8 + $0xe0] sm:$0xff] %v1835
    %1911 = vst [vmem:[#allocation8 + $0xe8] sm:$0xff] %v1836
    %1912 = vst [vmem:[#allocation8 + $0xf0] sm:$0xff] %v1837
    %1913 = vst [vmem:[#allocation8 + $0xf8] sm:$0xff] %v1838
    %1914 = vst [vmem:[#allocation8 + $0x100] sm:$0xff] %v1839
    %1915 = vst [vmem:[#allocation8 + $0x108] sm:$0xff] %v1840
    %1916 = vst [vmem:[#allocation8 + $0x110] sm:$0xff] %v1841
    %1917 = vst [vmem:[#allocation8 + $0x118] sm:$0xff] %v1842
    %1918 = vst [vmem:[#allocation8 + $0x120] sm:$0xff] %v1843
    %1919 = vst [vmem:[#allocation8 + $0x128] sm:$0xff] %v1844
    %1920 = vst [vmem:[#allocation8 + $0x130] sm:$0xff] %v1845
    %1921 = vst [vmem:[#allocation8 + $0x138] sm:$0xff] %v1846
    %1922 = vst [vmem:[#allocation8 + $0x140] sm:$0xff] %v1847
    %1923 = vst [vmem:[#allocation8 + $0x148] sm:$0xff] %v1848
    %1924 = vst [vmem:[#allocation8 + $0x150] sm:$0xff] %v1849
    %1925 = vst [vmem:[#allocation8 + $0x158] sm:$0xff] %v1850
    %1926 = vst [vmem:[#allocation8 + $0x160] sm:$0xff] %v1851
    %1927 = vst [vmem:[#allocation8 + $0x168] sm:$0xff] %v1852
    %1928 = vst [vmem:[#allocation8 + $0x170] sm:$0xff] %v1853
    %1929 = vst [vmem:[#allocation8 + $0x178] sm:$0xff] %v1854
    %1930 = vst [vmem:[#allocation8 + $0x180] sm:$0xff] %v1855
    %1931 = vst [vmem:[#allocation8 + $0x188] sm:$0xff] %v1856
    %1932 = vst [vmem:[#allocation8 + $0x190] sm:$0xff] %v1857
    %1933 = vst [vmem:[#allocation8 + $0x198] sm:$0xff] %v1858
    %1934 = vst [vmem:[#allocation8 + $0x1a0] sm:$0xff] %v1859
    %1935 = vst [vmem:[#allocation8 + $0x1a8] sm:$0xff] %v1860
    %1936 = vst [vmem:[#allocation8 + $0x1b0] sm:$0xff] %v1861
    %1937 = vst [vmem:[#allocation8 + $0x1b8] sm:$0xff] %v1862
    %1938 = vst [vmem:[#allocation8 + $0x1c0] sm:$0xff] %v1863
    %1939 = vst [vmem:[#allocation8 + $0x1c8] sm:$0xff] %v1864
    %1940 = vst [vmem:[#allocation8 + $0x1d0] sm:$0xff] %v1865
    %1941 = vst [vmem:[#allocation8 + $0x1d8] sm:$0xff] %v1866
    %1942 = vst [vmem:[#allocation8 + $0x1e0] sm:$0xff] %v1867
    %1943 = vst [vmem:[#allocation8 + $0x1e8] sm:$0xff] %v1868
    %1944 = vst [vmem:[#allocation8 + $0x1f0] sm:$0xff] %v1869
    %1945 = vst [vmem:[#allocation8 + $0x1f8] sm:$0xff] %v1870
    %1946 = vst [vmem:[#allocation8 + $0x200] sm:$0xff] %v1871
    %1947 = vst [vmem:[#allocation8 + $0x208] sm:$0xff] %v1872
    %1948 = vst [vmem:[#allocation8 + $0x210] sm:$0xff] %v1873
    %1949 = vst [vmem:[#allocation8 + $0x218] sm:$0xff] %v1874
    %1950 = vst [vmem:[#allocation8 + $0x220] sm:$0xff] %v1875
    %1951 = vst [vmem:[#allocation8 + $0x228] sm:$0xff] %v1876
    %1952 = vst [vmem:[#allocation8 + $0x230] sm:$0xff] %v1877
    %1953 = vst [vmem:[#allocation8 + $0x238] sm:$0xff] %v1878
    %1954 = vst [vmem:[#allocation8 + $0x240] sm:$0xf] %v1879
    %1955 = vst [vmem:[#allocation8 + $0x248] sm:$0xf] %v1880
    %1956 = vst [vmem:[#allocation8 + $0x250] sm:$0xf] %v1881
    // Predicated region
    $region26: #{tpu_custom_call.1} parent=1 // pred_check
      _
    $region27: #{tpu_custom_call.1} parent=1 // pred_check_branch
      %1958 = sbr.rel (0) target = $region29
    $region28: #{tpu_custom_call.1} parent=1 // pred_region
      %1960 = vsyncadd [#allocation4], 0
      %s1961 = sshll.u32 [#allocation8], 4
      %s1962 = int_to_ptr.vmem [resolvable:$true] %s1961
      %s1963 = sshll.u32 %s3, 4
      %s1964 = int_to_ptr.hbm [resolvable:$true] %s1963
      %1969 = dma.vmem_to_hbm [thread:$0]  %s1962, 9600, %s1964, [#allocation4], 384, 384, 24
    $region29: #{tpu_custom_call.1} parent=1 // pred_fallthru
      _
    // Predicated region
    $region30: #{tpu_custom_call.1} parent=1 // pred_check
      _
    $region31: #{tpu_custom_call.1} parent=1 // pred_check_branch
      %1971 = sbr.rel (0) target = $region33
    $region32: #{tpu_custom_call.1} parent=1 // pred_region
      %1973 = dma.done [#allocation4], 9600
    $region33: #{tpu_custom_call.1} parent=1 // pred_fallthru
      _
    %1974 = vsyncpa [#allocation3], 1
    %1975 = vsyncpa [#allocation6], 1
    %1976 = vsyncpa [#allocation4], 1

</llo_original>
